<compile_context>
chip_gen: v6e
topology: v6e:2x2x1
jax: 0.10.0
libtpu: 0.0.40
codegen_flags: <defaults>
</compile_context>

<pallas_src>
import jax
import jax.numpy as jnp
from jax import lax
from jax.experimental import pallas as pl
from jax.experimental.pallas import tpu as pltpu

_SELECT_VOCAB_MAX = 32  # use VPU select-accumulate (bit-exact, no MXU) when V <= 32


def _make_small_kernel(v):
    """Single-tile kernel: idx (TILE_N, 1) int32, table (V, E) -> out (TILE_N, E)."""

    def kernel(idx_ref, table_ref, out_ref):
        idx = idx_ref[...]                                   # (TILE_N, 1)
        if v <= _SELECT_VOCAB_MAX:
            acc = jnp.zeros(out_ref.shape, dtype=table_ref.dtype)
            for row in range(v):                             # unrolled VPU selects
                acc = jnp.where(idx == row, table_ref[row:row + 1, :], acc)
            out_ref[...] = acc.astype(out_ref.dtype)
        else:
            col_ids = lax.broadcasted_iota(jnp.int32, (1, v), 1)      # (1, V)
            onehot = (idx == col_ids).astype(table_ref.dtype)         # (TILE_N, V)
            out_ref[...] = lax.dot_general(
                onehot, table_ref[...],
                dimension_numbers=(((1,), (0,)), ((), ())),
                preferred_element_type=jnp.float32,
            ).astype(out_ref.dtype)

    return kernel


def _make_large_kernel(v):
    """Multi-tile kernel: idx (1, TILE_N) int32, table_t (E, V) -> out (E, TILE_N)."""

    def kernel(idx_ref, table_t_ref, out_ref):
        idx = idx_ref[...]                                   # (1, TILE_N)
        if v <= _SELECT_VOCAB_MAX:
            acc = jnp.zeros(out_ref.shape, dtype=table_t_ref.dtype)
            for row in range(v):                             # unrolled VPU selects
                acc = jnp.where(idx == row, table_t_ref[:, row:row + 1], acc)
            out_ref[...] = acc.astype(out_ref.dtype)
        else:
            row_ids = lax.broadcasted_iota(jnp.int32, (v, 1), 0)      # (V, 1)
            onehot = (row_ids == idx).astype(table_t_ref.dtype)       # (V, TILE_N)
            # (E, V) @ (V, TILE_N) -> (E, TILE_N), LHS contracts on its last dim.
            out_ref[...] = lax.dot_general(
                table_t_ref[...], onehot,
                dimension_numbers=(((1,), (0,)), ((), ())),
                preferred_element_type=jnp.float32,
            ).astype(out_ref.dtype)

    return kernel


def embedding_forward(indices, table, *, max_tile_n=8192):
    """indices: (N,) int32, table: (V, E) float32 -> (N, E) float32.

    Matches PyTorch nn.Embedding(V, E) forward for in-range indices.
    """
    n = int(indices.shape[0])
    v, e = (int(s) for s in table.shape)

    n_pad = max(128, ((n + 127) // 128) * 128)
    # Pad with 0 (a valid row); padded positions are sliced off below.
    idx_flat = jnp.pad(indices.astype(jnp.int32), (0, n_pad - n))

    cost = pl.CostEstimate(
        flops=n_pad * e,   # gather-like, not one-hot FLOPs
        transcendentals=0,
        bytes_accessed=n_pad * 4 + n_pad * e * 4 + v * e * 4,
    )

    if n_pad <= 128:
        # ---- Single-tile path: output directly as (N_pad, E), no transpose. ----
        idx_col = idx_flat.reshape(n_pad, 1)
        out = pl.pallas_call(
            _make_small_kernel(v),
            out_shape=jax.ShapeDtypeStruct((n_pad, e), table.dtype),
            grid_spec=pltpu.PrefetchScalarGridSpec(
                num_scalar_prefetch=0,
                grid=(1,),
                in_specs=[
                    pl.BlockSpec((n_pad, 1), lambda i: (0, 0)),
                    pl.BlockSpec((v, e), lambda i: (0, 0)),
                ],
                out_specs=pl.BlockSpec((n_pad, e), lambda i: (0, 0)),
            ),
            compiler_params=pltpu.CompilerParams(
                dimension_semantics=("arbitrary",),
            ),
            cost_estimate=cost,
        )(idx_col, table)
        return out[:n]

    # ---- Multi-tile lane-dense path: transposed (E, N_pad) output. ----
    # Cap tile at ~n_pad/2 (multiple of 128) so v7x's second TC gets work.
    half = (((n_pad // 2) + 127) // 128) * 128
    tile_n = max(128, min(max_tile_n, half))
    n_pad2 = ((n_pad + tile_n - 1) // tile_n) * tile_n
    if n_pad2 != n_pad:
        idx_flat = jnp.pad(idx_flat, (0, n_pad2 - n_pad))
        n_pad = n_pad2
    idx_row = idx_flat.reshape(1, n_pad)
    table_t = table.T  # one-time (V, E) -> (E, V) transpose in XLA

    out_t = pl.pallas_call(
        _make_large_kernel(v),
        out_shape=jax.ShapeDtypeStruct((e, n_pad), table.dtype),
        grid_spec=pltpu.PrefetchScalarGridSpec(
            num_scalar_prefetch=0,
            grid=(n_pad // tile_n,),
            in_specs=[
                pl.BlockSpec((1, tile_n), lambda i: (0, i)),   # lane-dense indices
                pl.BlockSpec((e, v), lambda i: (0, 0)),        # resident table
            ],
            out_specs=pl.BlockSpec((e, tile_n), lambda i: (0, i)),
        ),
        compiler_params=pltpu.CompilerParams(
            dimension_semantics=("parallel",),   # megacore sharding on v7x
        ),
        cost_estimate=cost,
    )(idx_row, table_t)

    # Back to PyTorch layout: (E, N_pad) -> (N, E).
    return out_t.T[:n]


if __name__ == "__main__":
    key = jax.random.PRNGKey(0)
    k_tab, k_idx, k_idx2 = jax.random.split(key, 3)

    num_devices = 16      # num_devices argument of EmbeddingModel.__init__
    emb_dim = 11          # fixed by the module: nn.Embedding(num_devices, 11)
    n = 8                 # length of device_num_tensor

    # nn.Embedding default init: weight ~ N(0, 1)
    table = jax.random.normal(k_tab, (num_devices, emb_dim), dtype=jnp.float32)
    device_num_tensor = jax.random.randint(
        k_idx, (n,), minval=0, maxval=num_devices, dtype=jnp.int32
    )

    # Single-tile path (the actual module shapes).
    out = embedding_forward(device_num_tensor, table)
    out = jax.block_until_ready(out)
    ref = jnp.take(table, device_num_tensor, axis=0)
    assert out.shape == (n, emb_dim)
    assert jnp.array_equal(out, ref), "mismatch vs reference gather (small path)"

    # Multi-tile lane-dense path (exercised for robustness at a still-small N).
    n_big = 300
    idx_big = jax.random.randint(
        k_idx2, (n_big,), minval=0, maxval=num_devices, dtype=jnp.int32
    )
    out_big = jax.block_until_ready(embedding_forward(idx_big, table))
    ref_big = jnp.take(table, idx_big, axis=0)
    assert out_big.shape == (n_big, emb_dim)
    assert jnp.array_equal(out_big, ref_big), "mismatch vs reference gather (large path)"

    # TODO(synk): PyTorch raises on out-of-range indices; here they yield
    # zero rows (no select / one-hot match). Callers must pass valid indices.
    print("KERNEL_OK")
</pallas_src>

<mosaic_0001>
module attributes {stable_mosaic.version = 11 : i64} {
  func.func @kernel(%arg0: i32, %arg1: memref<128x1xi32, #tpu.memory_space<vmem>>, %arg2: memref<16x11xf32, #tpu.memory_space<vmem>>, %arg3: memref<128x11xf32, #tpu.memory_space<vmem>>) attributes {dimension_semantics = [#tpu.dimension_semantics<arbitrary>], iteration_bounds = array<i64: 1>, scalar_prefetch = 0 : i64, scratch_operands = 0 : i64, tpu.core_type = #tpu.core_type<tc>, window_params = [{pipeline_mode = #tpu.pipeline_mode<synchronous>, transform_indices = @transform_0, window_bounds = array<i64: 128, 1>}, {pipeline_mode = #tpu.pipeline_mode<synchronous>, transform_indices = @transform_1, window_bounds = array<i64: 16, 11>}, {pipeline_mode = #tpu.pipeline_mode<synchronous>, transform_indices = @transform_2, window_bounds = array<i64: 128, 11>}]} {
    %c0 = arith.constant 0 : index
    %c0_0 = arith.constant 0 : index
    %0 = vector.load %arg1[%c0, %c0_0] : memref<128x1xi32, #tpu.memory_space<vmem>>, vector<128x1xi32>
    %cst = arith.constant 0.000000e+00 : f32
    %1 = vector.broadcast %cst : f32 to vector<128x11xf32>
    %c0_i32 = arith.constant 0 : i32
    %2 = vector.broadcast %c0_i32 : i32 to vector<128x1xi32>
    %3 = arith.cmpi eq, %0, %2 : vector<128x1xi32>
    %c0_1 = arith.constant 0 : index
    %c0_2 = arith.constant 0 : index
    %4 = vector.load %arg2[%c0_1, %c0_2] : memref<16x11xf32, #tpu.memory_space<vmem>>, vector<1x11xf32>
    %5 = vector.shape_cast %3 : vector<128x1xi1> to vector<128x1xi1>
    %6 = vector.broadcast %5 : vector<128x1xi1> to vector<128x11xi1>
    %7 = vector.shape_cast %4 : vector<1x11xf32> to vector<1x11xf32>
    %8 = vector.broadcast %7 : vector<1x11xf32> to vector<128x11xf32>
    %9 = arith.select %6, %8, %1 : vector<128x11xi1>, vector<128x11xf32>
    %c1_i32 = arith.constant 1 : i32
    %10 = vector.broadcast %c1_i32 : i32 to vector<128x1xi32>
    %11 = arith.cmpi eq, %0, %10 : vector<128x1xi32>
    %c1 = arith.constant 1 : index
    %c0_3 = arith.constant 0 : index
    %12 = vector.load %arg2[%c1, %c0_3] : memref<16x11xf32, #tpu.memory_space<vmem>>, vector<1x11xf32>
    %13 = vector.shape_cast %11 : vector<128x1xi1> to vector<128x1xi1>
    %14 = vector.broadcast %13 : vector<128x1xi1> to vector<128x11xi1>
    %15 = vector.shape_cast %12 : vector<1x11xf32> to vector<1x11xf32>
    %16 = vector.broadcast %15 : vector<1x11xf32> to vector<128x11xf32>
    %17 = arith.select %14, %16, %9 : vector<128x11xi1>, vector<128x11xf32>
    %c2_i32 = arith.constant 2 : i32
    %18 = vector.broadcast %c2_i32 : i32 to vector<128x1xi32>
    %19 = arith.cmpi eq, %0, %18 : vector<128x1xi32>
    %c2 = arith.constant 2 : index
    %c0_4 = arith.constant 0 : index
    %20 = vector.load %arg2[%c2, %c0_4] : memref<16x11xf32, #tpu.memory_space<vmem>>, vector<1x11xf32>
    %21 = vector.shape_cast %19 : vector<128x1xi1> to vector<128x1xi1>
    %22 = vector.broadcast %21 : vector<128x1xi1> to vector<128x11xi1>
    %23 = vector.shape_cast %20 : vector<1x11xf32> to vector<1x11xf32>
    %24 = vector.broadcast %23 : vector<1x11xf32> to vector<128x11xf32>
    %25 = arith.select %22, %24, %17 : vector<128x11xi1>, vector<128x11xf32>
    %c3_i32 = arith.constant 3 : i32
    %26 = vector.broadcast %c3_i32 : i32 to vector<128x1xi32>
    %27 = arith.cmpi eq, %0, %26 : vector<128x1xi32>
    %c3 = arith.constant 3 : index
    %c0_5 = arith.constant 0 : index
    %28 = vector.load %arg2[%c3, %c0_5] : memref<16x11xf32, #tpu.memory_space<vmem>>, vector<1x11xf32>
    %29 = vector.shape_cast %27 : vector<128x1xi1> to vector<128x1xi1>
    %30 = vector.broadcast %29 : vector<128x1xi1> to vector<128x11xi1>
    %31 = vector.shape_cast %28 : vector<1x11xf32> to vector<1x11xf32>
    %32 = vector.broadcast %31 : vector<1x11xf32> to vector<128x11xf32>
    %33 = arith.select %30, %32, %25 : vector<128x11xi1>, vector<128x11xf32>
    %c4_i32 = arith.constant 4 : i32
    %34 = vector.broadcast %c4_i32 : i32 to vector<128x1xi32>
    %35 = arith.cmpi eq, %0, %34 : vector<128x1xi32>
    %c4 = arith.constant 4 : index
    %c0_6 = arith.constant 0 : index
    %36 = vector.load %arg2[%c4, %c0_6] : memref<16x11xf32, #tpu.memory_space<vmem>>, vector<1x11xf32>
    %37 = vector.shape_cast %35 : vector<128x1xi1> to vector<128x1xi1>
    %38 = vector.broadcast %37 : vector<128x1xi1> to vector<128x11xi1>
    %39 = vector.shape_cast %36 : vector<1x11xf32> to vector<1x11xf32>
    %40 = vector.broadcast %39 : vector<1x11xf32> to vector<128x11xf32>
    %41 = arith.select %38, %40, %33 : vector<128x11xi1>, vector<128x11xf32>
    %c5_i32 = arith.constant 5 : i32
    %42 = vector.broadcast %c5_i32 : i32 to vector<128x1xi32>
    %43 = arith.cmpi eq, %0, %42 : vector<128x1xi32>
    %c5 = arith.constant 5 : index
    %c0_7 = arith.constant 0 : index
    %44 = vector.load %arg2[%c5, %c0_7] : memref<16x11xf32, #tpu.memory_space<vmem>>, vector<1x11xf32>
    %45 = vector.shape_cast %43 : vector<128x1xi1> to vector<128x1xi1>
    %46 = vector.broadcast %45 : vector<128x1xi1> to vector<128x11xi1>
    %47 = vector.shape_cast %44 : vector<1x11xf32> to vector<1x11xf32>
    %48 = vector.broadcast %47 : vector<1x11xf32> to vector<128x11xf32>
    %49 = arith.select %46, %48, %41 : vector<128x11xi1>, vector<128x11xf32>
    %c6_i32 = arith.constant 6 : i32
    %50 = vector.broadcast %c6_i32 : i32 to vector<128x1xi32>
    %51 = arith.cmpi eq, %0, %50 : vector<128x1xi32>
    %c6 = arith.constant 6 : index
    %c0_8 = arith.constant 0 : index
    %52 = vector.load %arg2[%c6, %c0_8] : memref<16x11xf32, #tpu.memory_space<vmem>>, vector<1x11xf32>
    %53 = vector.shape_cast %51 : vector<128x1xi1> to vector<128x1xi1>
    %54 = vector.broadcast %53 : vector<128x1xi1> to vector<128x11xi1>
    %55 = vector.shape_cast %52 : vector<1x11xf32> to vector<1x11xf32>
    %56 = vector.broadcast %55 : vector<1x11xf32> to vector<128x11xf32>
    %57 = arith.select %54, %56, %49 : vector<128x11xi1>, vector<128x11xf32>
    %c7_i32 = arith.constant 7 : i32
    %58 = vector.broadcast %c7_i32 : i32 to vector<128x1xi32>
    %59 = arith.cmpi eq, %0, %58 : vector<128x1xi32>
    %c7 = arith.constant 7 : index
    %c0_9 = arith.constant 0 : index
    %60 = vector.load %arg2[%c7, %c0_9] : memref<16x11xf32, #tpu.memory_space<vmem>>, vector<1x11xf32>
    %61 = vector.shape_cast %59 : vector<128x1xi1> to vector<128x1xi1>
    %62 = vector.broadcast %61 : vector<128x1xi1> to vector<128x11xi1>
    %63 = vector.shape_cast %60 : vector<1x11xf32> to vector<1x11xf32>
    %64 = vector.broadcast %63 : vector<1x11xf32> to vector<128x11xf32>
    %65 = arith.select %62, %64, %57 : vector<128x11xi1>, vector<128x11xf32>
    %c8_i32 = arith.constant 8 : i32
    %66 = vector.broadcast %c8_i32 : i32 to vector<128x1xi32>
    %67 = arith.cmpi eq, %0, %66 : vector<128x1xi32>
    %c8 = arith.constant 8 : index
    %c0_10 = arith.constant 0 : index
    %68 = vector.load %arg2[%c8, %c0_10] : memref<16x11xf32, #tpu.memory_space<vmem>>, vector<1x11xf32>
    %69 = vector.shape_cast %67 : vector<128x1xi1> to vector<128x1xi1>
    %70 = vector.broadcast %69 : vector<128x1xi1> to vector<128x11xi1>
    %71 = vector.shape_cast %68 : vector<1x11xf32> to vector<1x11xf32>
    %72 = vector.broadcast %71 : vector<1x11xf32> to vector<128x11xf32>
    %73 = arith.select %70, %72, %65 : vector<128x11xi1>, vector<128x11xf32>
    %c9_i32 = arith.constant 9 : i32
    %74 = vector.broadcast %c9_i32 : i32 to vector<128x1xi32>
    %75 = arith.cmpi eq, %0, %74 : vector<128x1xi32>
    %c9 = arith.constant 9 : index
    %c0_11 = arith.constant 0 : index
    %76 = vector.load %arg2[%c9, %c0_11] : memref<16x11xf32, #tpu.memory_space<vmem>>, vector<1x11xf32>
    %77 = vector.shape_cast %75 : vector<128x1xi1> to vector<128x1xi1>
    %78 = vector.broadcast %77 : vector<128x1xi1> to vector<128x11xi1>
    %79 = vector.shape_cast %76 : vector<1x11xf32> to vector<1x11xf32>
    %80 = vector.broadcast %79 : vector<1x11xf32> to vector<128x11xf32>
    %81 = arith.select %78, %80, %73 : vector<128x11xi1>, vector<128x11xf32>
    %c10_i32 = arith.constant 10 : i32
    %82 = vector.broadcast %c10_i32 : i32 to vector<128x1xi32>
    %83 = arith.cmpi eq, %0, %82 : vector<128x1xi32>
    %c10 = arith.constant 10 : index
    %c0_12 = arith.constant 0 : index
    %84 = vector.load %arg2[%c10, %c0_12] : memref<16x11xf32, #tpu.memory_space<vmem>>, vector<1x11xf32>
    %85 = vector.shape_cast %83 : vector<128x1xi1> to vector<128x1xi1>
    %86 = vector.broadcast %85 : vector<128x1xi1> to vector<128x11xi1>
    %87 = vector.shape_cast %84 : vector<1x11xf32> to vector<1x11xf32>
    %88 = vector.broadcast %87 : vector<1x11xf32> to vector<128x11xf32>
    %89 = arith.select %86, %88, %81 : vector<128x11xi1>, vector<128x11xf32>
    %c11_i32 = arith.constant 11 : i32
    %90 = vector.broadcast %c11_i32 : i32 to vector<128x1xi32>
    %91 = arith.cmpi eq, %0, %90 : vector<128x1xi32>
    %c11 = arith.constant 11 : index
    %c0_13 = arith.constant 0 : index
    %92 = vector.load %arg2[%c11, %c0_13] : memref<16x11xf32, #tpu.memory_space<vmem>>, vector<1x11xf32>
    %93 = vector.shape_cast %91 : vector<128x1xi1> to vector<128x1xi1>
    %94 = vector.broadcast %93 : vector<128x1xi1> to vector<128x11xi1>
    %95 = vector.shape_cast %92 : vector<1x11xf32> to vector<1x11xf32>
    %96 = vector.broadcast %95 : vector<1x11xf32> to vector<128x11xf32>
    %97 = arith.select %94, %96, %89 : vector<128x11xi1>, vector<128x11xf32>
    %c12_i32 = arith.constant 12 : i32
    %98 = vector.broadcast %c12_i32 : i32 to vector<128x1xi32>
    %99 = arith.cmpi eq, %0, %98 : vector<128x1xi32>
    %c12 = arith.constant 12 : index
    %c0_14 = arith.constant 0 : index
    %100 = vector.load %arg2[%c12, %c0_14] : memref<16x11xf32, #tpu.memory_space<vmem>>, vector<1x11xf32>
    %101 = vector.shape_cast %99 : vector<128x1xi1> to vector<128x1xi1>
    %102 = vector.broadcast %101 : vector<128x1xi1> to vector<128x11xi1>
    %103 = vector.shape_cast %100 : vector<1x11xf32> to vector<1x11xf32>
    %104 = vector.broadcast %103 : vector<1x11xf32> to vector<128x11xf32>
    %105 = arith.select %102, %104, %97 : vector<128x11xi1>, vector<128x11xf32>
    %c13_i32 = arith.constant 13 : i32
    %106 = vector.broadcast %c13_i32 : i32 to vector<128x1xi32>
    %107 = arith.cmpi eq, %0, %106 : vector<128x1xi32>
    %c13 = arith.constant 13 : index
    %c0_15 = arith.constant 0 : index
    %108 = vector.load %arg2[%c13, %c0_15] : memref<16x11xf32, #tpu.memory_space<vmem>>, vector<1x11xf32>
    %109 = vector.shape_cast %107 : vector<128x1xi1> to vector<128x1xi1>
    %110 = vector.broadcast %109 : vector<128x1xi1> to vector<128x11xi1>
    %111 = vector.shape_cast %108 : vector<1x11xf32> to vector<1x11xf32>
    %112 = vector.broadcast %111 : vector<1x11xf32> to vector<128x11xf32>
    %113 = arith.select %110, %112, %105 : vector<128x11xi1>, vector<128x11xf32>
    %c14_i32 = arith.constant 14 : i32
    %114 = vector.broadcast %c14_i32 : i32 to vector<128x1xi32>
    %115 = arith.cmpi eq, %0, %114 : vector<128x1xi32>
    %c14 = arith.constant 14 : index
    %c0_16 = arith.constant 0 : index
    %116 = vector.load %arg2[%c14, %c0_16] : memref<16x11xf32, #tpu.memory_space<vmem>>, vector<1x11xf32>
    %117 = vector.shape_cast %115 : vector<128x1xi1> to vector<128x1xi1>
    %118 = vector.broadcast %117 : vector<128x1xi1> to vector<128x11xi1>
    %119 = vector.shape_cast %116 : vector<1x11xf32> to vector<1x11xf32>
    %120 = vector.broadcast %119 : vector<1x11xf32> to vector<128x11xf32>
    %121 = arith.select %118, %120, %113 : vector<128x11xi1>, vector<128x11xf32>
    %c15_i32 = arith.constant 15 : i32
    %122 = vector.broadcast %c15_i32 : i32 to vector<128x1xi32>
    %123 = arith.cmpi eq, %0, %122 : vector<128x1xi32>
    %c15 = arith.constant 15 : index
    %c0_17 = arith.constant 0 : index
    %124 = vector.load %arg2[%c15, %c0_17] : memref<16x11xf32, #tpu.memory_space<vmem>>, vector<1x11xf32>
    %125 = vector.shape_cast %123 : vector<128x1xi1> to vector<128x1xi1>
    %126 = vector.broadcast %125 : vector<128x1xi1> to vector<128x11xi1>
    %127 = vector.shape_cast %124 : vector<1x11xf32> to vector<1x11xf32>
    %128 = vector.broadcast %127 : vector<1x11xf32> to vector<128x11xf32>
    %129 = arith.select %126, %128, %121 : vector<128x11xi1>, vector<128x11xf32>
    %c0_18 = arith.constant 0 : index
    %c0_19 = arith.constant 0 : index
    %130 = vector.load %arg3[%c0_18, %c0_19] : memref<128x11xf32, #tpu.memory_space<vmem>>, vector<128x11xf32>
    tpu.vector_store %arg3[%c0_18, %c0_19], %129 {strides = array<i32>} : memref<128x11xf32, #tpu.memory_space<vmem>>, vector<128x11xf32>,
    return
  }
  func.func @transform_0(%arg0: i32) -> (i32, i32) {
    %c0_i32 = arith.constant 0 : i32
    %c0_i32_0 = arith.constant 0 : i32
    %c0_i32_1 = arith.constant 0 : i32
    return %c0_i32, %c0_i32_0 : i32, i32
  }
  func.func @transform_1(%arg0: i32) -> (i32, i32) {
    %c0_i32 = arith.constant 0 : i32
    %c0_i32_0 = arith.constant 0 : i32
    %c0_i32_1 = arith.constant 0 : i32
    return %c0_i32, %c0_i32_0 : i32, i32
  }
  func.func @transform_2(%arg0: i32) -> (i32, i32) {
    %c0_i32 = arith.constant 0 : i32
    %c0_i32_0 = arith.constant 0 : i32
    %c0_i32_1 = arith.constant 0 : i32
    return %c0_i32, %c0_i32_0 : i32, i32
  }
}

</mosaic_0001>

<llo_original>
// kernel: tpu_custom_call.1
$region0: #{tpu_custom_call.1}
  #allocation0 [shape = 'u32[]', space=smem, size = 0x4, offset = 0x4, fixed_abs, tag = 'smem constant byte address 0x4 - core index']
  #allocation1 [shape = 'u32[144,128]{1,0:T(1,128)}', space=vmem, size = 0x12000, scoped, tag = 'internal scratch']
  %s0 = inlined_call_operand.vmem [shape: s32[128,1], index: 0, kind: input, shape index: {}]
  %s1 = inlined_call_operand.vmem [shape: f32[16,11], index: 1, kind: input, shape index: {}]
  %s2 = inlined_call_operand.vmem [shape: f32[128,11], index: 2, kind: output, shape index: {}]
  %s3 = sld [smem:[#allocation0]]
  $region18: #{tpu_custom_call.1} parent=0
    _
  %s5 = ssub.s32 1, %s3
  %s6 = scalar_select 0, %s5, %s3
  // Predicated region
  $region2: #{tpu_custom_call.1} parent=0 // pred_check
    _
  $region3: #{tpu_custom_call.1} parent=0 // pred_check_branch
    %8 = sbr.rel (0) target = $region5
  $region4: #{tpu_custom_call.1} parent=0 // pred_region
    _
  $region5: #{tpu_custom_call.1} parent=0 // pred_fallthru
    _
  // Predicated region
  $region6: #{tpu_custom_call.1} parent=0 // pred_check
    _
  $region7: #{tpu_custom_call.1} parent=0 // pred_check_branch
    %10 = sbr.rel (0) target = $region9
  $region8: #{tpu_custom_call.1} parent=0 // pred_region
    _
  $region9: #{tpu_custom_call.1} parent=0 // pred_fallthru
    _
  %v11 = vld [vmem:[%s0] sm:$0xff]
  %v12 = vld [vmem:[%s0 + $0x8] sm:$0xff]
  %v13 = vld [vmem:[%s0 + $0x10] sm:$0xff]
  %v14 = vld [vmem:[%s0 + $0x18] sm:$0xff]
  %v15 = vld [vmem:[%s0 + $0x20] sm:$0xff]
  %v16 = vld [vmem:[%s0 + $0x28] sm:$0xff]
  %v17 = vld [vmem:[%s0 + $0x30] sm:$0xff]
  %v18 = vld [vmem:[%s0 + $0x38] sm:$0xff]
  %v19 = vld [vmem:[%s0 + $0x40] sm:$0xff]
  %v20 = vld [vmem:[%s0 + $0x48] sm:$0xff]
  %v21 = vld [vmem:[%s0 + $0x50] sm:$0xff]
  %v22 = vld [vmem:[%s0 + $0x58] sm:$0xff]
  %v23 = vld [vmem:[%s0 + $0x60] sm:$0xff]
  %v24 = vld [vmem:[%s0 + $0x68] sm:$0xff]
  %v25 = vld [vmem:[%s0 + $0x70] sm:$0xff]
  %v26 = vld [vmem:[%s0 + $0x78] sm:$0xff]
  %vm27 = vcmp.eq.s32.totalorder %v11, 0
  %vm28 = vcmp.eq.s32.totalorder %v12, 0
  %vm29 = vcmp.eq.s32.totalorder %v13, 0
  %vm30 = vcmp.eq.s32.totalorder %v14, 0
  %vm31 = vcmp.eq.s32.totalorder %v15, 0
  %vm32 = vcmp.eq.s32.totalorder %v16, 0
  %vm33 = vcmp.eq.s32.totalorder %v17, 0
  %vm34 = vcmp.eq.s32.totalorder %v18, 0
  %vm35 = vcmp.eq.s32.totalorder %v19, 0
  %vm36 = vcmp.eq.s32.totalorder %v20, 0
  %vm37 = vcmp.eq.s32.totalorder %v21, 0
  %vm38 = vcmp.eq.s32.totalorder %v22, 0
  %vm39 = vcmp.eq.s32.totalorder %v23, 0
  %vm40 = vcmp.eq.s32.totalorder %v24, 0
  %vm41 = vcmp.eq.s32.totalorder %v25, 0
  %vm42 = vcmp.eq.s32.totalorder %v26, 0
  %v43 = vld [vmem:[%s1] sm:$0x1]
  %v44 = vsel %vm27, 1, 0
  %v45 = vsel %vm28, 1, 0
  %v46 = vsel %vm29, 1, 0
  %v47 = vsel %vm30, 1, 0
  %v48 = vsel %vm31, 1, 0
  %v49 = vsel %vm32, 1, 0
  %v50 = vsel %vm33, 1, 0
  %v51 = vsel %vm34, 1, 0
  %v52 = vsel %vm35, 1, 0
  %v53 = vsel %vm36, 1, 0
  %v54 = vsel %vm37, 1, 0
  %v55 = vsel %vm38, 1, 0
  %v56 = vsel %vm39, 1, 0
  %v57 = vsel %vm40, 1, 0
  %v58 = vsel %vm41, 1, 0
  %v59 = vsel %vm42, 1, 0
  %60 = vset.pattern.permute.xlu0 0
  %61 = vperm.xlu0 %60, %v44
  %v62 = vpop.permute.xlu0 %61
  %63 = vset.pattern.permute.xlu0 0
  %64 = vperm.xlu0 %63, %v45
  %v65 = vpop.permute.xlu0 %64
  %66 = vset.pattern.permute.xlu0 0
  %67 = vperm.xlu0 %66, %v46
  %v68 = vpop.permute.xlu0 %67
  %69 = vset.pattern.permute.xlu0 0
  %70 = vperm.xlu0 %69, %v47
  %v71 = vpop.permute.xlu0 %70
  %72 = vset.pattern.permute.xlu0 0
  %73 = vperm.xlu0 %72, %v48
  %v74 = vpop.permute.xlu0 %73
  %75 = vset.pattern.permute.xlu0 0
  %76 = vperm.xlu0 %75, %v49
  %v77 = vpop.permute.xlu0 %76
  %78 = vset.pattern.permute.xlu0 0
  %79 = vperm.xlu0 %78, %v50
  %v80 = vpop.permute.xlu0 %79
  %81 = vset.pattern.permute.xlu0 0
  %82 = vperm.xlu0 %81, %v51
  %v83 = vpop.permute.xlu0 %82
  %84 = vset.pattern.permute.xlu0 0
  %85 = vperm.xlu0 %84, %v52
  %v86 = vpop.permute.xlu0 %85
  %87 = vset.pattern.permute.xlu0 0
  %88 = vperm.xlu0 %87, %v53
  %v89 = vpop.permute.xlu0 %88
  %90 = vset.pattern.permute.xlu0 0
  %91 = vperm.xlu0 %90, %v54
  %v92 = vpop.permute.xlu0 %91
  %93 = vset.pattern.permute.xlu0 0
  %94 = vperm.xlu0 %93, %v55
  %v95 = vpop.permute.xlu0 %94
  %96 = vset.pattern.permute.xlu0 0
  %97 = vperm.xlu0 %96, %v56
  %v98 = vpop.permute.xlu0 %97
  %99 = vset.pattern.permute.xlu0 0
  %100 = vperm.xlu0 %99, %v57
  %v101 = vpop.permute.xlu0 %100
  %102 = vset.pattern.permute.xlu0 0
  %103 = vperm.xlu0 %102, %v58
  %v104 = vpop.permute.xlu0 %103
  %105 = vset.pattern.permute.xlu0 0
  %106 = vperm.xlu0 %105, %v59
  %v107 = vpop.permute.xlu0 %106
  %vm108 = vcmp.eq.s32.totalorder %v62, 1
  %vm109 = vcmp.eq.s32.totalorder %v65, 1
  %vm110 = vcmp.eq.s32.totalorder %v68, 1
  %vm111 = vcmp.eq.s32.totalorder %v71, 1
  %vm112 = vcmp.eq.s32.totalorder %v74, 1
  %vm113 = vcmp.eq.s32.totalorder %v77, 1
  %vm114 = vcmp.eq.s32.totalorder %v80, 1
  %vm115 = vcmp.eq.s32.totalorder %v83, 1
  %vm116 = vcmp.eq.s32.totalorder %v86, 1
  %vm117 = vcmp.eq.s32.totalorder %v89, 1
  %vm118 = vcmp.eq.s32.totalorder %v92, 1
  %vm119 = vcmp.eq.s32.totalorder %v95, 1
  %vm120 = vcmp.eq.s32.totalorder %v98, 1
  %vm121 = vcmp.eq.s32.totalorder %v101, 1
  %vm122 = vcmp.eq.s32.totalorder %v104, 1
  %vm123 = vcmp.eq.s32.totalorder %v107, 1
  %v124 = vlaneseq
  %v125 = vshrl.u32 %v124, 7
  %v126 = vsub.s32 0, %v125
  %v127 = vrot.slane %v43, %v126
  %v128 = vsel %vm108, %v127, 0.0
  %v129 = vsel %vm109, %v127, 0.0
  %v130 = vsel %vm110, %v127, 0.0
  %v131 = vsel %vm111, %v127, 0.0
  %v132 = vsel %vm112, %v127, 0.0
  %v133 = vsel %vm113, %v127, 0.0
  %v134 = vsel %vm114, %v127, 0.0
  %v135 = vsel %vm115, %v127, 0.0
  %v136 = vsel %vm116, %v127, 0.0
  %v137 = vsel %vm117, %v127, 0.0
  %v138 = vsel %vm118, %v127, 0.0
  %v139 = vsel %vm119, %v127, 0.0
  %v140 = vsel %vm120, %v127, 0.0
  %v141 = vsel %vm121, %v127, 0.0
  %v142 = vsel %vm122, %v127, 0.0
  %v143 = vsel %vm123, %v127, 0.0
  %vm144 = vcmp.eq.s32.totalorder %v11, 1
  %vm145 = vcmp.eq.s32.totalorder %v12, 1
  %vm146 = vcmp.eq.s32.totalorder %v13, 1
  %vm147 = vcmp.eq.s32.totalorder %v14, 1
  %vm148 = vcmp.eq.s32.totalorder %v15, 1
  %vm149 = vcmp.eq.s32.totalorder %v16, 1
  %vm150 = vcmp.eq.s32.totalorder %v17, 1
  %vm151 = vcmp.eq.s32.totalorder %v18, 1
  %vm152 = vcmp.eq.s32.totalorder %v19, 1
  %vm153 = vcmp.eq.s32.totalorder %v20, 1
  %vm154 = vcmp.eq.s32.totalorder %v21, 1
  %vm155 = vcmp.eq.s32.totalorder %v22, 1
  %vm156 = vcmp.eq.s32.totalorder %v23, 1
  %vm157 = vcmp.eq.s32.totalorder %v24, 1
  %vm158 = vcmp.eq.s32.totalorder %v25, 1
  %vm159 = vcmp.eq.s32.totalorder %v26, 1
  %v160 = vld [vmem:[%s1 + $0x1] sm:$0x1]
  %v161 = vsel %vm144, 1, 0
  %v162 = vsel %vm145, 1, 0
  %v163 = vsel %vm146, 1, 0
  %v164 = vsel %vm147, 1, 0
  %v165 = vsel %vm148, 1, 0
  %v166 = vsel %vm149, 1, 0
  %v167 = vsel %vm150, 1, 0
  %v168 = vsel %vm151, 1, 0
  %v169 = vsel %vm152, 1, 0
  %v170 = vsel %vm153, 1, 0
  %v171 = vsel %vm154, 1, 0
  %v172 = vsel %vm155, 1, 0
  %v173 = vsel %vm156, 1, 0
  %v174 = vsel %vm157, 1, 0
  %v175 = vsel %vm158, 1, 0
  %v176 = vsel %vm159, 1, 0
  %177 = vset.pattern.permute.xlu0 0
  %178 = vperm.xlu0 %177, %v161
  %v179 = vpop.permute.xlu0 %178
  %180 = vset.pattern.permute.xlu0 0
  %181 = vperm.xlu0 %180, %v162
  %v182 = vpop.permute.xlu0 %181
  %183 = vset.pattern.permute.xlu0 0
  %184 = vperm.xlu0 %183, %v163
  %v185 = vpop.permute.xlu0 %184
  %186 = vset.pattern.permute.xlu0 0
  %187 = vperm.xlu0 %186, %v164
  %v188 = vpop.permute.xlu0 %187
  %189 = vset.pattern.permute.xlu0 0
  %190 = vperm.xlu0 %189, %v165
  %v191 = vpop.permute.xlu0 %190
  %192 = vset.pattern.permute.xlu0 0
  %193 = vperm.xlu0 %192, %v166
  %v194 = vpop.permute.xlu0 %193
  %195 = vset.pattern.permute.xlu0 0
  %196 = vperm.xlu0 %195, %v167
  %v197 = vpop.permute.xlu0 %196
  %198 = vset.pattern.permute.xlu0 0
  %199 = vperm.xlu0 %198, %v168
  %v200 = vpop.permute.xlu0 %199
  %201 = vset.pattern.permute.xlu0 0
  %202 = vperm.xlu0 %201, %v169
  %v203 = vpop.permute.xlu0 %202
  %204 = vset.pattern.permute.xlu0 0
  %205 = vperm.xlu0 %204, %v170
  %v206 = vpop.permute.xlu0 %205
  %207 = vset.pattern.permute.xlu0 0
  %208 = vperm.xlu0 %207, %v171
  %v209 = vpop.permute.xlu0 %208
  %210 = vset.pattern.permute.xlu0 0
  %211 = vperm.xlu0 %210, %v172
  %v212 = vpop.permute.xlu0 %211
  %213 = vset.pattern.permute.xlu0 0
  %214 = vperm.xlu0 %213, %v173
  %v215 = vpop.permute.xlu0 %214
  %216 = vset.pattern.permute.xlu0 0
  %217 = vperm.xlu0 %216, %v174
  %v218 = vpop.permute.xlu0 %217
  %219 = vset.pattern.permute.xlu0 0
  %220 = vperm.xlu0 %219, %v175
  %v221 = vpop.permute.xlu0 %220
  %222 = vset.pattern.permute.xlu0 0
  %223 = vperm.xlu0 %222, %v176
  %v224 = vpop.permute.xlu0 %223
  %vm225 = vcmp.eq.s32.totalorder %v179, 1
  %vm226 = vcmp.eq.s32.totalorder %v182, 1
  %vm227 = vcmp.eq.s32.totalorder %v185, 1
  %vm228 = vcmp.eq.s32.totalorder %v188, 1
  %vm229 = vcmp.eq.s32.totalorder %v191, 1
  %vm230 = vcmp.eq.s32.totalorder %v194, 1
  %vm231 = vcmp.eq.s32.totalorder %v197, 1
  %vm232 = vcmp.eq.s32.totalorder %v200, 1
  %vm233 = vcmp.eq.s32.totalorder %v203, 1
  %vm234 = vcmp.eq.s32.totalorder %v206, 1
  %vm235 = vcmp.eq.s32.totalorder %v209, 1
  %vm236 = vcmp.eq.s32.totalorder %v212, 1
  %vm237 = vcmp.eq.s32.totalorder %v215, 1
  %vm238 = vcmp.eq.s32.totalorder %v218, 1
  %vm239 = vcmp.eq.s32.totalorder %v221, 1
  %vm240 = vcmp.eq.s32.totalorder %v224, 1
  %v241 = vlaneseq
  %v242 = vshrl.u32 %v241, 7
  %v243 = vsub.s32 0, %v242
  %v244 = vrot.slane %v160, %v243
  %v245 = vsel %vm225, %v244, %v128
  %v246 = vsel %vm226, %v244, %v129
  %v247 = vsel %vm227, %v244, %v130
  %v248 = vsel %vm228, %v244, %v131
  %v249 = vsel %vm229, %v244, %v132
  %v250 = vsel %vm230, %v244, %v133
  %v251 = vsel %vm231, %v244, %v134
  %v252 = vsel %vm232, %v244, %v135
  %v253 = vsel %vm233, %v244, %v136
  %v254 = vsel %vm234, %v244, %v137
  %v255 = vsel %vm235, %v244, %v138
  %v256 = vsel %vm236, %v244, %v139
  %v257 = vsel %vm237, %v244, %v140
  %v258 = vsel %vm238, %v244, %v141
  %v259 = vsel %vm239, %v244, %v142
  %v260 = vsel %vm240, %v244, %v143
  %vm261 = vcmp.eq.s32.totalorder %v11, 2
  %vm262 = vcmp.eq.s32.totalorder %v12, 2
  %vm263 = vcmp.eq.s32.totalorder %v13, 2
  %vm264 = vcmp.eq.s32.totalorder %v14, 2
  %vm265 = vcmp.eq.s32.totalorder %v15, 2
  %vm266 = vcmp.eq.s32.totalorder %v16, 2
  %vm267 = vcmp.eq.s32.totalorder %v17, 2
  %vm268 = vcmp.eq.s32.totalorder %v18, 2
  %vm269 = vcmp.eq.s32.totalorder %v19, 2
  %vm270 = vcmp.eq.s32.totalorder %v20, 2
  %vm271 = vcmp.eq.s32.totalorder %v21, 2
  %vm272 = vcmp.eq.s32.totalorder %v22, 2
  %vm273 = vcmp.eq.s32.totalorder %v23, 2
  %vm274 = vcmp.eq.s32.totalorder %v24, 2
  %vm275 = vcmp.eq.s32.totalorder %v25, 2
  %vm276 = vcmp.eq.s32.totalorder %v26, 2
  %v277 = vld [vmem:[%s1 + $0x2] sm:$0x1]
  %v278 = vsel %vm261, 1, 0
  %v279 = vsel %vm262, 1, 0
  %v280 = vsel %vm263, 1, 0
  %v281 = vsel %vm264, 1, 0
  %v282 = vsel %vm265, 1, 0
  %v283 = vsel %vm266, 1, 0
  %v284 = vsel %vm267, 1, 0
  %v285 = vsel %vm268, 1, 0
  %v286 = vsel %vm269, 1, 0
  %v287 = vsel %vm270, 1, 0
  %v288 = vsel %vm271, 1, 0
  %v289 = vsel %vm272, 1, 0
  %v290 = vsel %vm273, 1, 0
  %v291 = vsel %vm274, 1, 0
  %v292 = vsel %vm275, 1, 0
  %v293 = vsel %vm276, 1, 0
  %294 = vset.pattern.permute.xlu0 0
  %295 = vperm.xlu0 %294, %v278
  %v296 = vpop.permute.xlu0 %295
  %297 = vset.pattern.permute.xlu0 0
  %298 = vperm.xlu0 %297, %v279
  %v299 = vpop.permute.xlu0 %298
  %300 = vset.pattern.permute.xlu0 0
  %301 = vperm.xlu0 %300, %v280
  %v302 = vpop.permute.xlu0 %301
  %303 = vset.pattern.permute.xlu0 0
  %304 = vperm.xlu0 %303, %v281
  %v305 = vpop.permute.xlu0 %304
  %306 = vset.pattern.permute.xlu0 0
  %307 = vperm.xlu0 %306, %v282
  %v308 = vpop.permute.xlu0 %307
  %309 = vset.pattern.permute.xlu0 0
  %310 = vperm.xlu0 %309, %v283
  %v311 = vpop.permute.xlu0 %310
  %312 = vset.pattern.permute.xlu0 0
  %313 = vperm.xlu0 %312, %v284
  %v314 = vpop.permute.xlu0 %313
  %315 = vset.pattern.permute.xlu0 0
  %316 = vperm.xlu0 %315, %v285
  %v317 = vpop.permute.xlu0 %316
  %318 = vset.pattern.permute.xlu0 0
  %319 = vperm.xlu0 %318, %v286
  %v320 = vpop.permute.xlu0 %319
  %321 = vset.pattern.permute.xlu0 0
  %322 = vperm.xlu0 %321, %v287
  %v323 = vpop.permute.xlu0 %322
  %324 = vset.pattern.permute.xlu0 0
  %325 = vperm.xlu0 %324, %v288
  %v326 = vpop.permute.xlu0 %325
  %327 = vset.pattern.permute.xlu0 0
  %328 = vperm.xlu0 %327, %v289
  %v329 = vpop.permute.xlu0 %328
  %330 = vset.pattern.permute.xlu0 0
  %331 = vperm.xlu0 %330, %v290
  %v332 = vpop.permute.xlu0 %331
  %333 = vset.pattern.permute.xlu0 0
  %334 = vperm.xlu0 %333, %v291
  %v335 = vpop.permute.xlu0 %334
  %336 = vset.pattern.permute.xlu0 0
  %337 = vperm.xlu0 %336, %v292
  %v338 = vpop.permute.xlu0 %337
  %339 = vset.pattern.permute.xlu0 0
  %340 = vperm.xlu0 %339, %v293
  %v341 = vpop.permute.xlu0 %340
  %vm342 = vcmp.eq.s32.totalorder %v296, 1
  %vm343 = vcmp.eq.s32.totalorder %v299, 1
  %vm344 = vcmp.eq.s32.totalorder %v302, 1
  %vm345 = vcmp.eq.s32.totalorder %v305, 1
  %vm346 = vcmp.eq.s32.totalorder %v308, 1
  %vm347 = vcmp.eq.s32.totalorder %v311, 1
  %vm348 = vcmp.eq.s32.totalorder %v314, 1
  %vm349 = vcmp.eq.s32.totalorder %v317, 1
  %vm350 = vcmp.eq.s32.totalorder %v320, 1
  %vm351 = vcmp.eq.s32.totalorder %v323, 1
  %vm352 = vcmp.eq.s32.totalorder %v326, 1
  %vm353 = vcmp.eq.s32.totalorder %v329, 1
  %vm354 = vcmp.eq.s32.totalorder %v332, 1
  %vm355 = vcmp.eq.s32.totalorder %v335, 1
  %vm356 = vcmp.eq.s32.totalorder %v338, 1
  %vm357 = vcmp.eq.s32.totalorder %v341, 1
  %v358 = vlaneseq
  %v359 = vshrl.u32 %v358, 7
  %v360 = vsub.s32 0, %v359
  %v361 = vrot.slane %v277, %v360
  %v362 = vsel %vm342, %v361, %v245
  %v363 = vsel %vm343, %v361, %v246
  %v364 = vsel %vm344, %v361, %v247
  %v365 = vsel %vm345, %v361, %v248
  %v366 = vsel %vm346, %v361, %v249
  %v367 = vsel %vm347, %v361, %v250
  %v368 = vsel %vm348, %v361, %v251
  %v369 = vsel %vm349, %v361, %v252
  %v370 = vsel %vm350, %v361, %v253
  %v371 = vsel %vm351, %v361, %v254
  %v372 = vsel %vm352, %v361, %v255
  %v373 = vsel %vm353, %v361, %v256
  %v374 = vsel %vm354, %v361, %v257
  %v375 = vsel %vm355, %v361, %v258
  %v376 = vsel %vm356, %v361, %v259
  %v377 = vsel %vm357, %v361, %v260
  %vm378 = vcmp.eq.s32.totalorder %v11, 3
  %vm379 = vcmp.eq.s32.totalorder %v12, 3
  %vm380 = vcmp.eq.s32.totalorder %v13, 3
  %vm381 = vcmp.eq.s32.totalorder %v14, 3
  %vm382 = vcmp.eq.s32.totalorder %v15, 3
  %vm383 = vcmp.eq.s32.totalorder %v16, 3
  %vm384 = vcmp.eq.s32.totalorder %v17, 3
  %vm385 = vcmp.eq.s32.totalorder %v18, 3
  %vm386 = vcmp.eq.s32.totalorder %v19, 3
  %vm387 = vcmp.eq.s32.totalorder %v20, 3
  %vm388 = vcmp.eq.s32.totalorder %v21, 3
  %vm389 = vcmp.eq.s32.totalorder %v22, 3
  %vm390 = vcmp.eq.s32.totalorder %v23, 3
  %vm391 = vcmp.eq.s32.totalorder %v24, 3
  %vm392 = vcmp.eq.s32.totalorder %v25, 3
  %vm393 = vcmp.eq.s32.totalorder %v26, 3
  %v394 = vld [vmem:[%s1 + $0x3] sm:$0x1]
  %v395 = vsel %vm378, 1, 0
  %v396 = vsel %vm379, 1, 0
  %v397 = vsel %vm380, 1, 0
  %v398 = vsel %vm381, 1, 0
  %v399 = vsel %vm382, 1, 0
  %v400 = vsel %vm383, 1, 0
  %v401 = vsel %vm384, 1, 0
  %v402 = vsel %vm385, 1, 0
  %v403 = vsel %vm386, 1, 0
  %v404 = vsel %vm387, 1, 0
  %v405 = vsel %vm388, 1, 0
  %v406 = vsel %vm389, 1, 0
  %v407 = vsel %vm390, 1, 0
  %v408 = vsel %vm391, 1, 0
  %v409 = vsel %vm392, 1, 0
  %v410 = vsel %vm393, 1, 0
  %411 = vset.pattern.permute.xlu0 0
  %412 = vperm.xlu0 %411, %v395
  %v413 = vpop.permute.xlu0 %412
  %414 = vset.pattern.permute.xlu0 0
  %415 = vperm.xlu0 %414, %v396
  %v416 = vpop.permute.xlu0 %415
  %417 = vset.pattern.permute.xlu0 0
  %418 = vperm.xlu0 %417, %v397
  %v419 = vpop.permute.xlu0 %418
  %420 = vset.pattern.permute.xlu0 0
  %421 = vperm.xlu0 %420, %v398
  %v422 = vpop.permute.xlu0 %421
  %423 = vset.pattern.permute.xlu0 0
  %424 = vperm.xlu0 %423, %v399
  %v425 = vpop.permute.xlu0 %424
  %426 = vset.pattern.permute.xlu0 0
  %427 = vperm.xlu0 %426, %v400
  %v428 = vpop.permute.xlu0 %427
  %429 = vset.pattern.permute.xlu0 0
  %430 = vperm.xlu0 %429, %v401
  %v431 = vpop.permute.xlu0 %430
  %432 = vset.pattern.permute.xlu0 0
  %433 = vperm.xlu0 %432, %v402
  %v434 = vpop.permute.xlu0 %433
  %435 = vset.pattern.permute.xlu0 0
  %436 = vperm.xlu0 %435, %v403
  %v437 = vpop.permute.xlu0 %436
  %438 = vset.pattern.permute.xlu0 0
  %439 = vperm.xlu0 %438, %v404
  %v440 = vpop.permute.xlu0 %439
  %441 = vset.pattern.permute.xlu0 0
  %442 = vperm.xlu0 %441, %v405
  %v443 = vpop.permute.xlu0 %442
  %444 = vset.pattern.permute.xlu0 0
  %445 = vperm.xlu0 %444, %v406
  %v446 = vpop.permute.xlu0 %445
  %447 = vset.pattern.permute.xlu0 0
  %448 = vperm.xlu0 %447, %v407
  %v449 = vpop.permute.xlu0 %448
  %450 = vset.pattern.permute.xlu0 0
  %451 = vperm.xlu0 %450, %v408
  %v452 = vpop.permute.xlu0 %451
  %453 = vset.pattern.permute.xlu0 0
  %454 = vperm.xlu0 %453, %v409
  %v455 = vpop.permute.xlu0 %454
  %456 = vset.pattern.permute.xlu0 0
  %457 = vperm.xlu0 %456, %v410
  %v458 = vpop.permute.xlu0 %457
  %vm459 = vcmp.eq.s32.totalorder %v413, 1
  %vm460 = vcmp.eq.s32.totalorder %v416, 1
  %vm461 = vcmp.eq.s32.totalorder %v419, 1
  %vm462 = vcmp.eq.s32.totalorder %v422, 1
  %vm463 = vcmp.eq.s32.totalorder %v425, 1
  %vm464 = vcmp.eq.s32.totalorder %v428, 1
  %vm465 = vcmp.eq.s32.totalorder %v431, 1
  %vm466 = vcmp.eq.s32.totalorder %v434, 1
  %vm467 = vcmp.eq.s32.totalorder %v437, 1
  %vm468 = vcmp.eq.s32.totalorder %v440, 1
  %vm469 = vcmp.eq.s32.totalorder %v443, 1
  %vm470 = vcmp.eq.s32.totalorder %v446, 1
  %vm471 = vcmp.eq.s32.totalorder %v449, 1
  %vm472 = vcmp.eq.s32.totalorder %v452, 1
  %vm473 = vcmp.eq.s32.totalorder %v455, 1
  %vm474 = vcmp.eq.s32.totalorder %v458, 1
  %v475 = vlaneseq
  %v476 = vshrl.u32 %v475, 7
  %v477 = vsub.s32 0, %v476
  %v478 = vrot.slane %v394, %v477
  %v479 = vsel %vm459, %v478, %v362
  %v480 = vsel %vm460, %v478, %v363
  %v481 = vsel %vm461, %v478, %v364
  %v482 = vsel %vm462, %v478, %v365
  %v483 = vsel %vm463, %v478, %v366
  %v484 = vsel %vm464, %v478, %v367
  %v485 = vsel %vm465, %v478, %v368
  %v486 = vsel %vm466, %v478, %v369
  %v487 = vsel %vm467, %v478, %v370
  %v488 = vsel %vm468, %v478, %v371
  %v489 = vsel %vm469, %v478, %v372
  %v490 = vsel %vm470, %v478, %v373
  %v491 = vsel %vm471, %v478, %v374
  %v492 = vsel %vm472, %v478, %v375
  %v493 = vsel %vm473, %v478, %v376
  %v494 = vsel %vm474, %v478, %v377
  %vm495 = vcmp.eq.s32.totalorder %v11, 4
  %vm496 = vcmp.eq.s32.totalorder %v12, 4
  %vm497 = vcmp.eq.s32.totalorder %v13, 4
  %vm498 = vcmp.eq.s32.totalorder %v14, 4
  %vm499 = vcmp.eq.s32.totalorder %v15, 4
  %vm500 = vcmp.eq.s32.totalorder %v16, 4
  %vm501 = vcmp.eq.s32.totalorder %v17, 4
  %vm502 = vcmp.eq.s32.totalorder %v18, 4
  %vm503 = vcmp.eq.s32.totalorder %v19, 4
  %vm504 = vcmp.eq.s32.totalorder %v20, 4
  %vm505 = vcmp.eq.s32.totalorder %v21, 4
  %vm506 = vcmp.eq.s32.totalorder %v22, 4
  %vm507 = vcmp.eq.s32.totalorder %v23, 4
  %vm508 = vcmp.eq.s32.totalorder %v24, 4
  %vm509 = vcmp.eq.s32.totalorder %v25, 4
  %vm510 = vcmp.eq.s32.totalorder %v26, 4
  %v511 = vld [vmem:[%s1 + $0x4] sm:$0x1]
  %v512 = vsel %vm495, 1, 0
  %v513 = vsel %vm496, 1, 0
  %v514 = vsel %vm497, 1, 0
  %v515 = vsel %vm498, 1, 0
  %v516 = vsel %vm499, 1, 0
  %v517 = vsel %vm500, 1, 0
  %v518 = vsel %vm501, 1, 0
  %v519 = vsel %vm502, 1, 0
  %v520 = vsel %vm503, 1, 0
  %v521 = vsel %vm504, 1, 0
  %v522 = vsel %vm505, 1, 0
  %v523 = vsel %vm506, 1, 0
  %v524 = vsel %vm507, 1, 0
  %v525 = vsel %vm508, 1, 0
  %v526 = vsel %vm509, 1, 0
  %v527 = vsel %vm510, 1, 0
  %528 = vset.pattern.permute.xlu0 0
  %529 = vperm.xlu0 %528, %v512
  %v530 = vpop.permute.xlu0 %529
  %531 = vset.pattern.permute.xlu0 0
  %532 = vperm.xlu0 %531, %v513
  %v533 = vpop.permute.xlu0 %532
  %534 = vset.pattern.permute.xlu0 0
  %535 = vperm.xlu0 %534, %v514
  %v536 = vpop.permute.xlu0 %535
  %537 = vset.pattern.permute.xlu0 0
  %538 = vperm.xlu0 %537, %v515
  %v539 = vpop.permute.xlu0 %538
  %540 = vset.pattern.permute.xlu0 0
  %541 = vperm.xlu0 %540, %v516
  %v542 = vpop.permute.xlu0 %541
  %543 = vset.pattern.permute.xlu0 0
  %544 = vperm.xlu0 %543, %v517
  %v545 = vpop.permute.xlu0 %544
  %546 = vset.pattern.permute.xlu0 0
  %547 = vperm.xlu0 %546, %v518
  %v548 = vpop.permute.xlu0 %547
  %549 = vset.pattern.permute.xlu0 0
  %550 = vperm.xlu0 %549, %v519
  %v551 = vpop.permute.xlu0 %550
  %552 = vset.pattern.permute.xlu0 0
  %553 = vperm.xlu0 %552, %v520
  %v554 = vpop.permute.xlu0 %553
  %555 = vset.pattern.permute.xlu0 0
  %556 = vperm.xlu0 %555, %v521
  %v557 = vpop.permute.xlu0 %556
  %558 = vset.pattern.permute.xlu0 0
  %559 = vperm.xlu0 %558, %v522
  %v560 = vpop.permute.xlu0 %559
  %561 = vset.pattern.permute.xlu0 0
  %562 = vperm.xlu0 %561, %v523
  %v563 = vpop.permute.xlu0 %562
  %564 = vset.pattern.permute.xlu0 0
  %565 = vperm.xlu0 %564, %v524
  %v566 = vpop.permute.xlu0 %565
  %567 = vset.pattern.permute.xlu0 0
  %568 = vperm.xlu0 %567, %v525
  %v569 = vpop.permute.xlu0 %568
  %570 = vset.pattern.permute.xlu0 0
  %571 = vperm.xlu0 %570, %v526
  %v572 = vpop.permute.xlu0 %571
  %573 = vset.pattern.permute.xlu0 0
  %574 = vperm.xlu0 %573, %v527
  %v575 = vpop.permute.xlu0 %574
  %vm576 = vcmp.eq.s32.totalorder %v530, 1
  %vm577 = vcmp.eq.s32.totalorder %v533, 1
  %vm578 = vcmp.eq.s32.totalorder %v536, 1
  %vm579 = vcmp.eq.s32.totalorder %v539, 1
  %vm580 = vcmp.eq.s32.totalorder %v542, 1
  %vm581 = vcmp.eq.s32.totalorder %v545, 1
  %vm582 = vcmp.eq.s32.totalorder %v548, 1
  %vm583 = vcmp.eq.s32.totalorder %v551, 1
  %vm584 = vcmp.eq.s32.totalorder %v554, 1
  %vm585 = vcmp.eq.s32.totalorder %v557, 1
  %vm586 = vcmp.eq.s32.totalorder %v560, 1
  %vm587 = vcmp.eq.s32.totalorder %v563, 1
  %vm588 = vcmp.eq.s32.totalorder %v566, 1
  %vm589 = vcmp.eq.s32.totalorder %v569, 1
  %vm590 = vcmp.eq.s32.totalorder %v572, 1
  %vm591 = vcmp.eq.s32.totalorder %v575, 1
  %v592 = vlaneseq
  %v593 = vshrl.u32 %v592, 7
  %v594 = vsub.s32 0, %v593
  %v595 = vrot.slane %v511, %v594
  %v596 = vsel %vm576, %v595, %v479
  %v597 = vsel %vm577, %v595, %v480
  %v598 = vsel %vm578, %v595, %v481
  %v599 = vsel %vm579, %v595, %v482
  %v600 = vsel %vm580, %v595, %v483
  %v601 = vsel %vm581, %v595, %v484
  %v602 = vsel %vm582, %v595, %v485
  %v603 = vsel %vm583, %v595, %v486
  %v604 = vsel %vm584, %v595, %v487
  %v605 = vsel %vm585, %v595, %v488
  %v606 = vsel %vm586, %v595, %v489
  %v607 = vsel %vm587, %v595, %v490
  %v608 = vsel %vm588, %v595, %v491
  %v609 = vsel %vm589, %v595, %v492
  %v610 = vsel %vm590, %v595, %v493
  %v611 = vsel %vm591, %v595, %v494
  %vm612 = vcmp.eq.s32.totalorder %v11, 5
  %vm613 = vcmp.eq.s32.totalorder %v12, 5
  %vm614 = vcmp.eq.s32.totalorder %v13, 5
  %vm615 = vcmp.eq.s32.totalorder %v14, 5
  %vm616 = vcmp.eq.s32.totalorder %v15, 5
  %vm617 = vcmp.eq.s32.totalorder %v16, 5
  %vm618 = vcmp.eq.s32.totalorder %v17, 5
  %vm619 = vcmp.eq.s32.totalorder %v18, 5
  %vm620 = vcmp.eq.s32.totalorder %v19, 5
  %vm621 = vcmp.eq.s32.totalorder %v20, 5
  %vm622 = vcmp.eq.s32.totalorder %v21, 5
  %vm623 = vcmp.eq.s32.totalorder %v22, 5
  %vm624 = vcmp.eq.s32.totalorder %v23, 5
  %vm625 = vcmp.eq.s32.totalorder %v24, 5
  %vm626 = vcmp.eq.s32.totalorder %v25, 5
  %vm627 = vcmp.eq.s32.totalorder %v26, 5
  %v628 = vld [vmem:[%s1 + $0x5] sm:$0x1]
  %v629 = vsel %vm612, 1, 0
  %v630 = vsel %vm613, 1, 0
  %v631 = vsel %vm614, 1, 0
  %v632 = vsel %vm615, 1, 0
  %v633 = vsel %vm616, 1, 0
  %v634 = vsel %vm617, 1, 0
  %v635 = vsel %vm618, 1, 0
  %v636 = vsel %vm619, 1, 0
  %v637 = vsel %vm620, 1, 0
  %v638 = vsel %vm621, 1, 0
  %v639 = vsel %vm622, 1, 0
  %v640 = vsel %vm623, 1, 0
  %v641 = vsel %vm624, 1, 0
  %v642 = vsel %vm625, 1, 0
  %v643 = vsel %vm626, 1, 0
  %v644 = vsel %vm627, 1, 0
  %645 = vset.pattern.permute.xlu0 0
  %646 = vperm.xlu0 %645, %v629
  %v647 = vpop.permute.xlu0 %646
  %648 = vset.pattern.permute.xlu0 0
  %649 = vperm.xlu0 %648, %v630
  %v650 = vpop.permute.xlu0 %649
  %651 = vset.pattern.permute.xlu0 0
  %652 = vperm.xlu0 %651, %v631
  %v653 = vpop.permute.xlu0 %652
  %654 = vset.pattern.permute.xlu0 0
  %655 = vperm.xlu0 %654, %v632
  %v656 = vpop.permute.xlu0 %655
  %657 = vset.pattern.permute.xlu0 0
  %658 = vperm.xlu0 %657, %v633
  %v659 = vpop.permute.xlu0 %658
  %660 = vset.pattern.permute.xlu0 0
  %661 = vperm.xlu0 %660, %v634
  %v662 = vpop.permute.xlu0 %661
  %663 = vset.pattern.permute.xlu0 0
  %664 = vperm.xlu0 %663, %v635
  %v665 = vpop.permute.xlu0 %664
  %666 = vset.pattern.permute.xlu0 0
  %667 = vperm.xlu0 %666, %v636
  %v668 = vpop.permute.xlu0 %667
  %669 = vset.pattern.permute.xlu0 0
  %670 = vperm.xlu0 %669, %v637
  %v671 = vpop.permute.xlu0 %670
  %672 = vset.pattern.permute.xlu0 0
  %673 = vperm.xlu0 %672, %v638
  %v674 = vpop.permute.xlu0 %673
  %675 = vset.pattern.permute.xlu0 0
  %676 = vperm.xlu0 %675, %v639
  %v677 = vpop.permute.xlu0 %676
  %678 = vset.pattern.permute.xlu0 0
  %679 = vperm.xlu0 %678, %v640
  %v680 = vpop.permute.xlu0 %679
  %681 = vset.pattern.permute.xlu0 0
  %682 = vperm.xlu0 %681, %v641
  %v683 = vpop.permute.xlu0 %682
  %684 = vset.pattern.permute.xlu0 0
  %685 = vperm.xlu0 %684, %v642
  %v686 = vpop.permute.xlu0 %685
  %687 = vset.pattern.permute.xlu0 0
  %688 = vperm.xlu0 %687, %v643
  %v689 = vpop.permute.xlu0 %688
  %690 = vset.pattern.permute.xlu0 0
  %691 = vperm.xlu0 %690, %v644
  %v692 = vpop.permute.xlu0 %691
  %vm693 = vcmp.eq.s32.totalorder %v647, 1
  %vm694 = vcmp.eq.s32.totalorder %v650, 1
  %vm695 = vcmp.eq.s32.totalorder %v653, 1
  %vm696 = vcmp.eq.s32.totalorder %v656, 1
  %vm697 = vcmp.eq.s32.totalorder %v659, 1
  %vm698 = vcmp.eq.s32.totalorder %v662, 1
  %vm699 = vcmp.eq.s32.totalorder %v665, 1
  %vm700 = vcmp.eq.s32.totalorder %v668, 1
  %vm701 = vcmp.eq.s32.totalorder %v671, 1
  %vm702 = vcmp.eq.s32.totalorder %v674, 1
  %vm703 = vcmp.eq.s32.totalorder %v677, 1
  %vm704 = vcmp.eq.s32.totalorder %v680, 1
  %vm705 = vcmp.eq.s32.totalorder %v683, 1
  %vm706 = vcmp.eq.s32.totalorder %v686, 1
  %vm707 = vcmp.eq.s32.totalorder %v689, 1
  %vm708 = vcmp.eq.s32.totalorder %v692, 1
  %v709 = vlaneseq
  %v710 = vshrl.u32 %v709, 7
  %v711 = vsub.s32 0, %v710
  %v712 = vrot.slane %v628, %v711
  %v713 = vsel %vm693, %v712, %v596
  %v714 = vsel %vm694, %v712, %v597
  %v715 = vsel %vm695, %v712, %v598
  %v716 = vsel %vm696, %v712, %v599
  %v717 = vsel %vm697, %v712, %v600
  %v718 = vsel %vm698, %v712, %v601
  %v719 = vsel %vm699, %v712, %v602
  %v720 = vsel %vm700, %v712, %v603
  %v721 = vsel %vm701, %v712, %v604
  %v722 = vsel %vm702, %v712, %v605
  %v723 = vsel %vm703, %v712, %v606
  %v724 = vsel %vm704, %v712, %v607
  %v725 = vsel %vm705, %v712, %v608
  %v726 = vsel %vm706, %v712, %v609
  %v727 = vsel %vm707, %v712, %v610
  %v728 = vsel %vm708, %v712, %v611
  %vm729 = vcmp.eq.s32.totalorder %v11, 6
  %vm730 = vcmp.eq.s32.totalorder %v12, 6
  %vm731 = vcmp.eq.s32.totalorder %v13, 6
  %vm732 = vcmp.eq.s32.totalorder %v14, 6
  %vm733 = vcmp.eq.s32.totalorder %v15, 6
  %vm734 = vcmp.eq.s32.totalorder %v16, 6
  %vm735 = vcmp.eq.s32.totalorder %v17, 6
  %vm736 = vcmp.eq.s32.totalorder %v18, 6
  %vm737 = vcmp.eq.s32.totalorder %v19, 6
  %vm738 = vcmp.eq.s32.totalorder %v20, 6
  %vm739 = vcmp.eq.s32.totalorder %v21, 6
  %vm740 = vcmp.eq.s32.totalorder %v22, 6
  %vm741 = vcmp.eq.s32.totalorder %v23, 6
  %vm742 = vcmp.eq.s32.totalorder %v24, 6
  %vm743 = vcmp.eq.s32.totalorder %v25, 6
  %vm744 = vcmp.eq.s32.totalorder %v26, 6
  %v745 = vld [vmem:[%s1 + $0x6] sm:$0x1]
  %v746 = vsel %vm729, 1, 0
  %v747 = vsel %vm730, 1, 0
  %v748 = vsel %vm731, 1, 0
  %v749 = vsel %vm732, 1, 0
  %v750 = vsel %vm733, 1, 0
  %v751 = vsel %vm734, 1, 0
  %v752 = vsel %vm735, 1, 0
  %v753 = vsel %vm736, 1, 0
  %v754 = vsel %vm737, 1, 0
  %v755 = vsel %vm738, 1, 0
  %v756 = vsel %vm739, 1, 0
  %v757 = vsel %vm740, 1, 0
  %v758 = vsel %vm741, 1, 0
  %v759 = vsel %vm742, 1, 0
  %v760 = vsel %vm743, 1, 0
  %v761 = vsel %vm744, 1, 0
  %762 = vset.pattern.permute.xlu0 0
  %763 = vperm.xlu0 %762, %v746
  %v764 = vpop.permute.xlu0 %763
  %765 = vset.pattern.permute.xlu0 0
  %766 = vperm.xlu0 %765, %v747
  %v767 = vpop.permute.xlu0 %766
  %768 = vset.pattern.permute.xlu0 0
  %769 = vperm.xlu0 %768, %v748
  %v770 = vpop.permute.xlu0 %769
  %771 = vset.pattern.permute.xlu0 0
  %772 = vperm.xlu0 %771, %v749
  %v773 = vpop.permute.xlu0 %772
  %774 = vset.pattern.permute.xlu0 0
  %775 = vperm.xlu0 %774, %v750
  %v776 = vpop.permute.xlu0 %775
  %777 = vset.pattern.permute.xlu0 0
  %778 = vperm.xlu0 %777, %v751
  %v779 = vpop.permute.xlu0 %778
  %780 = vset.pattern.permute.xlu0 0
  %781 = vperm.xlu0 %780, %v752
  %v782 = vpop.permute.xlu0 %781
  %783 = vset.pattern.permute.xlu0 0
  %784 = vperm.xlu0 %783, %v753
  %v785 = vpop.permute.xlu0 %784
  %786 = vset.pattern.permute.xlu0 0
  %787 = vperm.xlu0 %786, %v754
  %v788 = vpop.permute.xlu0 %787
  %789 = vset.pattern.permute.xlu0 0
  %790 = vperm.xlu0 %789, %v755
  %v791 = vpop.permute.xlu0 %790
  %792 = vset.pattern.permute.xlu0 0
  %793 = vperm.xlu0 %792, %v756
  %v794 = vpop.permute.xlu0 %793
  %795 = vset.pattern.permute.xlu0 0
  %796 = vperm.xlu0 %795, %v757
  %v797 = vpop.permute.xlu0 %796
  %798 = vset.pattern.permute.xlu0 0
  %799 = vperm.xlu0 %798, %v758
  %v800 = vpop.permute.xlu0 %799
  %801 = vset.pattern.permute.xlu0 0
  %802 = vperm.xlu0 %801, %v759
  %v803 = vpop.permute.xlu0 %802
  %804 = vset.pattern.permute.xlu0 0
  %805 = vperm.xlu0 %804, %v760
  %v806 = vpop.permute.xlu0 %805
  %807 = vset.pattern.permute.xlu0 0
  %808 = vperm.xlu0 %807, %v761
  %v809 = vpop.permute.xlu0 %808
  %vm810 = vcmp.eq.s32.totalorder %v764, 1
  %vm811 = vcmp.eq.s32.totalorder %v767, 1
  %vm812 = vcmp.eq.s32.totalorder %v770, 1
  %vm813 = vcmp.eq.s32.totalorder %v773, 1
  %vm814 = vcmp.eq.s32.totalorder %v776, 1
  %vm815 = vcmp.eq.s32.totalorder %v779, 1
  %vm816 = vcmp.eq.s32.totalorder %v782, 1
  %vm817 = vcmp.eq.s32.totalorder %v785, 1
  %vm818 = vcmp.eq.s32.totalorder %v788, 1
  %vm819 = vcmp.eq.s32.totalorder %v791, 1
  %vm820 = vcmp.eq.s32.totalorder %v794, 1
  %vm821 = vcmp.eq.s32.totalorder %v797, 1
  %vm822 = vcmp.eq.s32.totalorder %v800, 1
  %vm823 = vcmp.eq.s32.totalorder %v803, 1
  %vm824 = vcmp.eq.s32.totalorder %v806, 1
  %vm825 = vcmp.eq.s32.totalorder %v809, 1
  %v826 = vlaneseq
  %v827 = vshrl.u32 %v826, 7
  %v828 = vsub.s32 0, %v827
  %v829 = vrot.slane %v745, %v828
  %v830 = vsel %vm810, %v829, %v713
  %v831 = vsel %vm811, %v829, %v714
  %v832 = vsel %vm812, %v829, %v715
  %v833 = vsel %vm813, %v829, %v716
  %v834 = vsel %vm814, %v829, %v717
  %v835 = vsel %vm815, %v829, %v718
  %v836 = vsel %vm816, %v829, %v719
  %v837 = vsel %vm817, %v829, %v720
  %v838 = vsel %vm818, %v829, %v721
  %v839 = vsel %vm819, %v829, %v722
  %v840 = vsel %vm820, %v829, %v723
  %v841 = vsel %vm821, %v829, %v724
  %v842 = vsel %vm822, %v829, %v725
  %v843 = vsel %vm823, %v829, %v726
  %v844 = vsel %vm824, %v829, %v727
  %v845 = vsel %vm825, %v829, %v728
  %vm846 = vcmp.eq.s32.totalorder %v11, 7
  %vm847 = vcmp.eq.s32.totalorder %v12, 7
  %vm848 = vcmp.eq.s32.totalorder %v13, 7
  %vm849 = vcmp.eq.s32.totalorder %v14, 7
  %vm850 = vcmp.eq.s32.totalorder %v15, 7
  %vm851 = vcmp.eq.s32.totalorder %v16, 7
  %vm852 = vcmp.eq.s32.totalorder %v17, 7
  %vm853 = vcmp.eq.s32.totalorder %v18, 7
  %vm854 = vcmp.eq.s32.totalorder %v19, 7
  %vm855 = vcmp.eq.s32.totalorder %v20, 7
  %vm856 = vcmp.eq.s32.totalorder %v21, 7
  %vm857 = vcmp.eq.s32.totalorder %v22, 7
  %vm858 = vcmp.eq.s32.totalorder %v23, 7
  %vm859 = vcmp.eq.s32.totalorder %v24, 7
  %vm860 = vcmp.eq.s32.totalorder %v25, 7
  %vm861 = vcmp.eq.s32.totalorder %v26, 7
  %v862 = vld [vmem:[%s1 + $0x7] sm:$0x1]
  %v863 = vsel %vm846, 1, 0
  %v864 = vsel %vm847, 1, 0
  %v865 = vsel %vm848, 1, 0
  %v866 = vsel %vm849, 1, 0
  %v867 = vsel %vm850, 1, 0
  %v868 = vsel %vm851, 1, 0
  %v869 = vsel %vm852, 1, 0
  %v870 = vsel %vm853, 1, 0
  %v871 = vsel %vm854, 1, 0
  %v872 = vsel %vm855, 1, 0
  %v873 = vsel %vm856, 1, 0
  %v874 = vsel %vm857, 1, 0
  %v875 = vsel %vm858, 1, 0
  %v876 = vsel %vm859, 1, 0
  %v877 = vsel %vm860, 1, 0
  %v878 = vsel %vm861, 1, 0
  %879 = vset.pattern.permute.xlu0 0
  %880 = vperm.xlu0 %879, %v863
  %v881 = vpop.permute.xlu0 %880
  %882 = vset.pattern.permute.xlu0 0
  %883 = vperm.xlu0 %882, %v864
  %v884 = vpop.permute.xlu0 %883
  %885 = vset.pattern.permute.xlu0 0
  %886 = vperm.xlu0 %885, %v865
  %v887 = vpop.permute.xlu0 %886
  %888 = vset.pattern.permute.xlu0 0
  %889 = vperm.xlu0 %888, %v866
  %v890 = vpop.permute.xlu0 %889
  %891 = vset.pattern.permute.xlu0 0
  %892 = vperm.xlu0 %891, %v867
  %v893 = vpop.permute.xlu0 %892
  %894 = vset.pattern.permute.xlu0 0
  %895 = vperm.xlu0 %894, %v868
  %v896 = vpop.permute.xlu0 %895
  %897 = vset.pattern.permute.xlu0 0
  %898 = vperm.xlu0 %897, %v869
  %v899 = vpop.permute.xlu0 %898
  %900 = vset.pattern.permute.xlu0 0
  %901 = vperm.xlu0 %900, %v870
  %v902 = vpop.permute.xlu0 %901
  %903 = vset.pattern.permute.xlu0 0
  %904 = vperm.xlu0 %903, %v871
  %v905 = vpop.permute.xlu0 %904
  %906 = vset.pattern.permute.xlu0 0
  %907 = vperm.xlu0 %906, %v872
  %v908 = vpop.permute.xlu0 %907
  %909 = vset.pattern.permute.xlu0 0
  %910 = vperm.xlu0 %909, %v873
  %v911 = vpop.permute.xlu0 %910
  %912 = vset.pattern.permute.xlu0 0
  %913 = vperm.xlu0 %912, %v874
  %v914 = vpop.permute.xlu0 %913
  %915 = vset.pattern.permute.xlu0 0
  %916 = vperm.xlu0 %915, %v875
  %v917 = vpop.permute.xlu0 %916
  %918 = vset.pattern.permute.xlu0 0
  %919 = vperm.xlu0 %918, %v876
  %v920 = vpop.permute.xlu0 %919
  %921 = vset.pattern.permute.xlu0 0
  %922 = vperm.xlu0 %921, %v877
  %v923 = vpop.permute.xlu0 %922
  %924 = vset.pattern.permute.xlu0 0
  %925 = vperm.xlu0 %924, %v878
  %v926 = vpop.permute.xlu0 %925
  %vm927 = vcmp.eq.s32.totalorder %v881, 1
  %vm928 = vcmp.eq.s32.totalorder %v884, 1
  %vm929 = vcmp.eq.s32.totalorder %v887, 1
  %vm930 = vcmp.eq.s32.totalorder %v890, 1
  %vm931 = vcmp.eq.s32.totalorder %v893, 1
  %vm932 = vcmp.eq.s32.totalorder %v896, 1
  %vm933 = vcmp.eq.s32.totalorder %v899, 1
  %vm934 = vcmp.eq.s32.totalorder %v902, 1
  %vm935 = vcmp.eq.s32.totalorder %v905, 1
  %vm936 = vcmp.eq.s32.totalorder %v908, 1
  %vm937 = vcmp.eq.s32.totalorder %v911, 1
  %vm938 = vcmp.eq.s32.totalorder %v914, 1
  %vm939 = vcmp.eq.s32.totalorder %v917, 1
  %vm940 = vcmp.eq.s32.totalorder %v920, 1
  %vm941 = vcmp.eq.s32.totalorder %v923, 1
  %vm942 = vcmp.eq.s32.totalorder %v926, 1
  %v943 = vlaneseq
  %v944 = vshrl.u32 %v943, 7
  %v945 = vsub.s32 0, %v944
  %v946 = vrot.slane %v862, %v945
  %v947 = vsel %vm927, %v946, %v830
  %v948 = vsel %vm928, %v946, %v831
  %v949 = vsel %vm929, %v946, %v832
  %v950 = vsel %vm930, %v946, %v833
  %v951 = vsel %vm931, %v946, %v834
  %v952 = vsel %vm932, %v946, %v835
  %v953 = vsel %vm933, %v946, %v836
  %v954 = vsel %vm934, %v946, %v837
  %v955 = vsel %vm935, %v946, %v838
  %v956 = vsel %vm936, %v946, %v839
  %v957 = vsel %vm937, %v946, %v840
  %v958 = vsel %vm938, %v946, %v841
  %v959 = vsel %vm939, %v946, %v842
  %v960 = vsel %vm940, %v946, %v843
  %v961 = vsel %vm941, %v946, %v844
  %v962 = vsel %vm942, %v946, %v845
  %vm963 = vcmp.eq.s32.totalorder %v11, 8
  %vm964 = vcmp.eq.s32.totalorder %v12, 8
  %vm965 = vcmp.eq.s32.totalorder %v13, 8
  %vm966 = vcmp.eq.s32.totalorder %v14, 8
  %vm967 = vcmp.eq.s32.totalorder %v15, 8
  %vm968 = vcmp.eq.s32.totalorder %v16, 8
  %vm969 = vcmp.eq.s32.totalorder %v17, 8
  %vm970 = vcmp.eq.s32.totalorder %v18, 8
  %vm971 = vcmp.eq.s32.totalorder %v19, 8
  %vm972 = vcmp.eq.s32.totalorder %v20, 8
  %vm973 = vcmp.eq.s32.totalorder %v21, 8
  %vm974 = vcmp.eq.s32.totalorder %v22, 8
  %vm975 = vcmp.eq.s32.totalorder %v23, 8
  %vm976 = vcmp.eq.s32.totalorder %v24, 8
  %vm977 = vcmp.eq.s32.totalorder %v25, 8
  %vm978 = vcmp.eq.s32.totalorder %v26, 8
  %v979 = vld [vmem:[%s1 + $0x8] sm:$0x1]
  %v980 = vsel %vm963, 1, 0
  %v981 = vsel %vm964, 1, 0
  %v982 = vsel %vm965, 1, 0
  %v983 = vsel %vm966, 1, 0
  %v984 = vsel %vm967, 1, 0
  %v985 = vsel %vm968, 1, 0
  %v986 = vsel %vm969, 1, 0
  %v987 = vsel %vm970, 1, 0
  %v988 = vsel %vm971, 1, 0
  %v989 = vsel %vm972, 1, 0
  %v990 = vsel %vm973, 1, 0
  %v991 = vsel %vm974, 1, 0
  %v992 = vsel %vm975, 1, 0
  %v993 = vsel %vm976, 1, 0
  %v994 = vsel %vm977, 1, 0
  %v995 = vsel %vm978, 1, 0
  %996 = vset.pattern.permute.xlu0 0
  %997 = vperm.xlu0 %996, %v980
  %v998 = vpop.permute.xlu0 %997
  %999 = vset.pattern.permute.xlu0 0
  %1000 = vperm.xlu0 %999, %v981
  %v1001 = vpop.permute.xlu0 %1000
  %1002 = vset.pattern.permute.xlu0 0
  %1003 = vperm.xlu0 %1002, %v982
  %v1004 = vpop.permute.xlu0 %1003
  %1005 = vset.pattern.permute.xlu0 0
  %1006 = vperm.xlu0 %1005, %v983
  %v1007 = vpop.permute.xlu0 %1006
  %1008 = vset.pattern.permute.xlu0 0
  %1009 = vperm.xlu0 %1008, %v984
  %v1010 = vpop.permute.xlu0 %1009
  %1011 = vset.pattern.permute.xlu0 0
  %1012 = vperm.xlu0 %1011, %v985
  %v1013 = vpop.permute.xlu0 %1012
  %1014 = vset.pattern.permute.xlu0 0
  %1015 = vperm.xlu0 %1014, %v986
  %v1016 = vpop.permute.xlu0 %1015
  %1017 = vset.pattern.permute.xlu0 0
  %1018 = vperm.xlu0 %1017, %v987
  %v1019 = vpop.permute.xlu0 %1018
  %1020 = vset.pattern.permute.xlu0 0
  %1021 = vperm.xlu0 %1020, %v988
  %v1022 = vpop.permute.xlu0 %1021
  %1023 = vset.pattern.permute.xlu0 0
  %1024 = vperm.xlu0 %1023, %v989
  %v1025 = vpop.permute.xlu0 %1024
  %1026 = vset.pattern.permute.xlu0 0
  %1027 = vperm.xlu0 %1026, %v990
  %v1028 = vpop.permute.xlu0 %1027
  %1029 = vset.pattern.permute.xlu0 0
  %1030 = vperm.xlu0 %1029, %v991
  %v1031 = vpop.permute.xlu0 %1030
  %1032 = vset.pattern.permute.xlu0 0
  %1033 = vperm.xlu0 %1032, %v992
  %v1034 = vpop.permute.xlu0 %1033
  %1035 = vset.pattern.permute.xlu0 0
  %1036 = vperm.xlu0 %1035, %v993
  %v1037 = vpop.permute.xlu0 %1036
  %1038 = vset.pattern.permute.xlu0 0
  %1039 = vperm.xlu0 %1038, %v994
  %v1040 = vpop.permute.xlu0 %1039
  %1041 = vset.pattern.permute.xlu0 0
  %1042 = vperm.xlu0 %1041, %v995
  %v1043 = vpop.permute.xlu0 %1042
  %vm1044 = vcmp.eq.s32.totalorder %v998, 1
  %vm1045 = vcmp.eq.s32.totalorder %v1001, 1
  %vm1046 = vcmp.eq.s32.totalorder %v1004, 1
  %vm1047 = vcmp.eq.s32.totalorder %v1007, 1
  %vm1048 = vcmp.eq.s32.totalorder %v1010, 1
  %vm1049 = vcmp.eq.s32.totalorder %v1013, 1
  %vm1050 = vcmp.eq.s32.totalorder %v1016, 1
  %vm1051 = vcmp.eq.s32.totalorder %v1019, 1
  %vm1052 = vcmp.eq.s32.totalorder %v1022, 1
  %vm1053 = vcmp.eq.s32.totalorder %v1025, 1
  %vm1054 = vcmp.eq.s32.totalorder %v1028, 1
  %vm1055 = vcmp.eq.s32.totalorder %v1031, 1
  %vm1056 = vcmp.eq.s32.totalorder %v1034, 1
  %vm1057 = vcmp.eq.s32.totalorder %v1037, 1
  %vm1058 = vcmp.eq.s32.totalorder %v1040, 1
  %vm1059 = vcmp.eq.s32.totalorder %v1043, 1
  %v1060 = vlaneseq
  %v1061 = vshrl.u32 %v1060, 7
  %v1062 = vsub.s32 0, %v1061
  %v1063 = vrot.slane %v979, %v1062
  %v1064 = vsel %vm1044, %v1063, %v947
  %v1065 = vsel %vm1045, %v1063, %v948
  %v1066 = vsel %vm1046, %v1063, %v949
  %v1067 = vsel %vm1047, %v1063, %v950
  %v1068 = vsel %vm1048, %v1063, %v951
  %v1069 = vsel %vm1049, %v1063, %v952
  %v1070 = vsel %vm1050, %v1063, %v953
  %v1071 = vsel %vm1051, %v1063, %v954
  %v1072 = vsel %vm1052, %v1063, %v955
  %v1073 = vsel %vm1053, %v1063, %v956
  %v1074 = vsel %vm1054, %v1063, %v957
  %v1075 = vsel %vm1055, %v1063, %v958
  %v1076 = vsel %vm1056, %v1063, %v959
  %v1077 = vsel %vm1057, %v1063, %v960
  %v1078 = vsel %vm1058, %v1063, %v961
  %v1079 = vsel %vm1059, %v1063, %v962
  %vm1080 = vcmp.eq.s32.totalorder %v11, 9
  %vm1081 = vcmp.eq.s32.totalorder %v12, 9
  %vm1082 = vcmp.eq.s32.totalorder %v13, 9
  %vm1083 = vcmp.eq.s32.totalorder %v14, 9
  %vm1084 = vcmp.eq.s32.totalorder %v15, 9
  %vm1085 = vcmp.eq.s32.totalorder %v16, 9
  %vm1086 = vcmp.eq.s32.totalorder %v17, 9
  %vm1087 = vcmp.eq.s32.totalorder %v18, 9
  %vm1088 = vcmp.eq.s32.totalorder %v19, 9
  %vm1089 = vcmp.eq.s32.totalorder %v20, 9
  %vm1090 = vcmp.eq.s32.totalorder %v21, 9
  %vm1091 = vcmp.eq.s32.totalorder %v22, 9
  %vm1092 = vcmp.eq.s32.totalorder %v23, 9
  %vm1093 = vcmp.eq.s32.totalorder %v24, 9
  %vm1094 = vcmp.eq.s32.totalorder %v25, 9
  %vm1095 = vcmp.eq.s32.totalorder %v26, 9
  %v1096 = vld [vmem:[%s1 + $0x9] sm:$0x1]
  %v1097 = vsel %vm1080, 1, 0
  %v1098 = vsel %vm1081, 1, 0
  %v1099 = vsel %vm1082, 1, 0
  %v1100 = vsel %vm1083, 1, 0
  %v1101 = vsel %vm1084, 1, 0
  %v1102 = vsel %vm1085, 1, 0
  %v1103 = vsel %vm1086, 1, 0
  %v1104 = vsel %vm1087, 1, 0
  %v1105 = vsel %vm1088, 1, 0
  %v1106 = vsel %vm1089, 1, 0
  %v1107 = vsel %vm1090, 1, 0
  %v1108 = vsel %vm1091, 1, 0
  %v1109 = vsel %vm1092, 1, 0
  %v1110 = vsel %vm1093, 1, 0
  %v1111 = vsel %vm1094, 1, 0
  %v1112 = vsel %vm1095, 1, 0
  %1113 = vset.pattern.permute.xlu0 0
  %1114 = vperm.xlu0 %1113, %v1097
  %v1115 = vpop.permute.xlu0 %1114
  %1116 = vset.pattern.permute.xlu0 0
  %1117 = vperm.xlu0 %1116, %v1098
  %v1118 = vpop.permute.xlu0 %1117
  %1119 = vset.pattern.permute.xlu0 0
  %1120 = vperm.xlu0 %1119, %v1099
  %v1121 = vpop.permute.xlu0 %1120
  %1122 = vset.pattern.permute.xlu0 0
  %1123 = vperm.xlu0 %1122, %v1100
  %v1124 = vpop.permute.xlu0 %1123
  %1125 = vset.pattern.permute.xlu0 0
  %1126 = vperm.xlu0 %1125, %v1101
  %v1127 = vpop.permute.xlu0 %1126
  %1128 = vset.pattern.permute.xlu0 0
  %1129 = vperm.xlu0 %1128, %v1102
  %v1130 = vpop.permute.xlu0 %1129
  %1131 = vset.pattern.permute.xlu0 0
  %1132 = vperm.xlu0 %1131, %v1103
  %v1133 = vpop.permute.xlu0 %1132
  %1134 = vset.pattern.permute.xlu0 0
  %1135 = vperm.xlu0 %1134, %v1104
  %v1136 = vpop.permute.xlu0 %1135
  %1137 = vset.pattern.permute.xlu0 0
  %1138 = vperm.xlu0 %1137, %v1105
  %v1139 = vpop.permute.xlu0 %1138
  %1140 = vset.pattern.permute.xlu0 0
  %1141 = vperm.xlu0 %1140, %v1106
  %v1142 = vpop.permute.xlu0 %1141
  %1143 = vset.pattern.permute.xlu0 0
  %1144 = vperm.xlu0 %1143, %v1107
  %v1145 = vpop.permute.xlu0 %1144
  %1146 = vset.pattern.permute.xlu0 0
  %1147 = vperm.xlu0 %1146, %v1108
  %v1148 = vpop.permute.xlu0 %1147
  %1149 = vset.pattern.permute.xlu0 0
  %1150 = vperm.xlu0 %1149, %v1109
  %v1151 = vpop.permute.xlu0 %1150
  %1152 = vset.pattern.permute.xlu0 0
  %1153 = vperm.xlu0 %1152, %v1110
  %v1154 = vpop.permute.xlu0 %1153
  %1155 = vset.pattern.permute.xlu0 0
  %1156 = vperm.xlu0 %1155, %v1111
  %v1157 = vpop.permute.xlu0 %1156
  %1158 = vset.pattern.permute.xlu0 0
  %1159 = vperm.xlu0 %1158, %v1112
  %v1160 = vpop.permute.xlu0 %1159
  %vm1161 = vcmp.eq.s32.totalorder %v1115, 1
  %vm1162 = vcmp.eq.s32.totalorder %v1118, 1
  %vm1163 = vcmp.eq.s32.totalorder %v1121, 1
  %vm1164 = vcmp.eq.s32.totalorder %v1124, 1
  %vm1165 = vcmp.eq.s32.totalorder %v1127, 1
  %vm1166 = vcmp.eq.s32.totalorder %v1130, 1
  %vm1167 = vcmp.eq.s32.totalorder %v1133, 1
  %vm1168 = vcmp.eq.s32.totalorder %v1136, 1
  %vm1169 = vcmp.eq.s32.totalorder %v1139, 1
  %vm1170 = vcmp.eq.s32.totalorder %v1142, 1
  %vm1171 = vcmp.eq.s32.totalorder %v1145, 1
  %vm1172 = vcmp.eq.s32.totalorder %v1148, 1
  %vm1173 = vcmp.eq.s32.totalorder %v1151, 1
  %vm1174 = vcmp.eq.s32.totalorder %v1154, 1
  %vm1175 = vcmp.eq.s32.totalorder %v1157, 1
  %vm1176 = vcmp.eq.s32.totalorder %v1160, 1
  %v1177 = vlaneseq
  %v1178 = vshrl.u32 %v1177, 7
  %v1179 = vsub.s32 0, %v1178
  %v1180 = vrot.slane %v1096, %v1179
  %v1181 = vsel %vm1161, %v1180, %v1064
  %v1182 = vsel %vm1162, %v1180, %v1065
  %v1183 = vsel %vm1163, %v1180, %v1066
  %v1184 = vsel %vm1164, %v1180, %v1067
  %v1185 = vsel %vm1165, %v1180, %v1068
  %v1186 = vsel %vm1166, %v1180, %v1069
  %v1187 = vsel %vm1167, %v1180, %v1070
  %v1188 = vsel %vm1168, %v1180, %v1071
  %v1189 = vsel %vm1169, %v1180, %v1072
  %v1190 = vsel %vm1170, %v1180, %v1073
  %v1191 = vsel %vm1171, %v1180, %v1074
  %v1192 = vsel %vm1172, %v1180, %v1075
  %v1193 = vsel %vm1173, %v1180, %v1076
  %v1194 = vsel %vm1174, %v1180, %v1077
  %v1195 = vsel %vm1175, %v1180, %v1078
  %v1196 = vsel %vm1176, %v1180, %v1079
  %vm1197 = vcmp.eq.s32.totalorder %v11, 10
  %vm1198 = vcmp.eq.s32.totalorder %v12, 10
  %vm1199 = vcmp.eq.s32.totalorder %v13, 10
  %vm1200 = vcmp.eq.s32.totalorder %v14, 10
  %vm1201 = vcmp.eq.s32.totalorder %v15, 10
  %vm1202 = vcmp.eq.s32.totalorder %v16, 10
  %vm1203 = vcmp.eq.s32.totalorder %v17, 10
  %vm1204 = vcmp.eq.s32.totalorder %v18, 10
  %vm1205 = vcmp.eq.s32.totalorder %v19, 10
  %vm1206 = vcmp.eq.s32.totalorder %v20, 10
  %vm1207 = vcmp.eq.s32.totalorder %v21, 10
  %vm1208 = vcmp.eq.s32.totalorder %v22, 10
  %vm1209 = vcmp.eq.s32.totalorder %v23, 10
  %vm1210 = vcmp.eq.s32.totalorder %v24, 10
  %vm1211 = vcmp.eq.s32.totalorder %v25, 10
  %vm1212 = vcmp.eq.s32.totalorder %v26, 10
  %v1213 = vld [vmem:[%s1 + $0xa] sm:$0x1]
  %v1214 = vsel %vm1197, 1, 0
  %v1215 = vsel %vm1198, 1, 0
  %v1216 = vsel %vm1199, 1, 0
  %v1217 = vsel %vm1200, 1, 0
  %v1218 = vsel %vm1201, 1, 0
  %v1219 = vsel %vm1202, 1, 0
  %v1220 = vsel %vm1203, 1, 0
  %v1221 = vsel %vm1204, 1, 0
  %v1222 = vsel %vm1205, 1, 0
  %v1223 = vsel %vm1206, 1, 0
  %v1224 = vsel %vm1207, 1, 0
  %v1225 = vsel %vm1208, 1, 0
  %v1226 = vsel %vm1209, 1, 0
  %v1227 = vsel %vm1210, 1, 0
  %v1228 = vsel %vm1211, 1, 0
  %v1229 = vsel %vm1212, 1, 0
  %1230 = vset.pattern.permute.xlu0 0
  %1231 = vperm.xlu0 %1230, %v1214
  %v1232 = vpop.permute.xlu0 %1231
  %1233 = vset.pattern.permute.xlu0 0
  %1234 = vperm.xlu0 %1233, %v1215
  %v1235 = vpop.permute.xlu0 %1234
  %1236 = vset.pattern.permute.xlu0 0
  %1237 = vperm.xlu0 %1236, %v1216
  %v1238 = vpop.permute.xlu0 %1237
  %1239 = vset.pattern.permute.xlu0 0
  %1240 = vperm.xlu0 %1239, %v1217
  %v1241 = vpop.permute.xlu0 %1240
  %1242 = vset.pattern.permute.xlu0 0
  %1243 = vperm.xlu0 %1242, %v1218
  %v1244 = vpop.permute.xlu0 %1243
  %1245 = vset.pattern.permute.xlu0 0
  %1246 = vperm.xlu0 %1245, %v1219
  %v1247 = vpop.permute.xlu0 %1246
  %1248 = vset.pattern.permute.xlu0 0
  %1249 = vperm.xlu0 %1248, %v1220
  %v1250 = vpop.permute.xlu0 %1249
  %1251 = vset.pattern.permute.xlu0 0
  %1252 = vperm.xlu0 %1251, %v1221
  %v1253 = vpop.permute.xlu0 %1252
  %1254 = vset.pattern.permute.xlu0 0
  %1255 = vperm.xlu0 %1254, %v1222
  %v1256 = vpop.permute.xlu0 %1255
  %1257 = vset.pattern.permute.xlu0 0
  %1258 = vperm.xlu0 %1257, %v1223
  %v1259 = vpop.permute.xlu0 %1258
  %1260 = vset.pattern.permute.xlu0 0
  %1261 = vperm.xlu0 %1260, %v1224
  %v1262 = vpop.permute.xlu0 %1261
  %1263 = vset.pattern.permute.xlu0 0
  %1264 = vperm.xlu0 %1263, %v1225
  %v1265 = vpop.permute.xlu0 %1264
  %1266 = vset.pattern.permute.xlu0 0
  %1267 = vperm.xlu0 %1266, %v1226
  %v1268 = vpop.permute.xlu0 %1267
  %1269 = vset.pattern.permute.xlu0 0
  %1270 = vperm.xlu0 %1269, %v1227
  %v1271 = vpop.permute.xlu0 %1270
  %1272 = vset.pattern.permute.xlu0 0
  %1273 = vperm.xlu0 %1272, %v1228
  %v1274 = vpop.permute.xlu0 %1273
  %1275 = vset.pattern.permute.xlu0 0
  %1276 = vperm.xlu0 %1275, %v1229
  %v1277 = vpop.permute.xlu0 %1276
  %vm1278 = vcmp.eq.s32.totalorder %v1232, 1
  %vm1279 = vcmp.eq.s32.totalorder %v1235, 1
  %vm1280 = vcmp.eq.s32.totalorder %v1238, 1
  %vm1281 = vcmp.eq.s32.totalorder %v1241, 1
  %vm1282 = vcmp.eq.s32.totalorder %v1244, 1
  %vm1283 = vcmp.eq.s32.totalorder %v1247, 1
  %vm1284 = vcmp.eq.s32.totalorder %v1250, 1
  %vm1285 = vcmp.eq.s32.totalorder %v1253, 1
  %vm1286 = vcmp.eq.s32.totalorder %v1256, 1
  %vm1287 = vcmp.eq.s32.totalorder %v1259, 1
  %vm1288 = vcmp.eq.s32.totalorder %v1262, 1
  %vm1289 = vcmp.eq.s32.totalorder %v1265, 1
  %vm1290 = vcmp.eq.s32.totalorder %v1268, 1
  %vm1291 = vcmp.eq.s32.totalorder %v1271, 1
  %vm1292 = vcmp.eq.s32.totalorder %v1274, 1
  %vm1293 = vcmp.eq.s32.totalorder %v1277, 1
  %v1294 = vlaneseq
  %v1295 = vshrl.u32 %v1294, 7
  %v1296 = vsub.s32 0, %v1295
  %v1297 = vrot.slane %v1213, %v1296
  %v1298 = vsel %vm1278, %v1297, %v1181
  %v1299 = vsel %vm1279, %v1297, %v1182
  %v1300 = vsel %vm1280, %v1297, %v1183
  %v1301 = vsel %vm1281, %v1297, %v1184
  %v1302 = vsel %vm1282, %v1297, %v1185
  %v1303 = vsel %vm1283, %v1297, %v1186
  %v1304 = vsel %vm1284, %v1297, %v1187
  %v1305 = vsel %vm1285, %v1297, %v1188
  %v1306 = vsel %vm1286, %v1297, %v1189
  %v1307 = vsel %vm1287, %v1297, %v1190
  %v1308 = vsel %vm1288, %v1297, %v1191
  %v1309 = vsel %vm1289, %v1297, %v1192
  %v1310 = vsel %vm1290, %v1297, %v1193
  %v1311 = vsel %vm1291, %v1297, %v1194
  %v1312 = vsel %vm1292, %v1297, %v1195
  %v1313 = vsel %vm1293, %v1297, %v1196
  %vm1314 = vcmp.eq.s32.totalorder %v11, 11
  %vm1315 = vcmp.eq.s32.totalorder %v12, 11
  %vm1316 = vcmp.eq.s32.totalorder %v13, 11
  %vm1317 = vcmp.eq.s32.totalorder %v14, 11
  %vm1318 = vcmp.eq.s32.totalorder %v15, 11
  %vm1319 = vcmp.eq.s32.totalorder %v16, 11
  %vm1320 = vcmp.eq.s32.totalorder %v17, 11
  %vm1321 = vcmp.eq.s32.totalorder %v18, 11
  %vm1322 = vcmp.eq.s32.totalorder %v19, 11
  %vm1323 = vcmp.eq.s32.totalorder %v20, 11
  %vm1324 = vcmp.eq.s32.totalorder %v21, 11
  %vm1325 = vcmp.eq.s32.totalorder %v22, 11
  %vm1326 = vcmp.eq.s32.totalorder %v23, 11
  %vm1327 = vcmp.eq.s32.totalorder %v24, 11
  %vm1328 = vcmp.eq.s32.totalorder %v25, 11
  %vm1329 = vcmp.eq.s32.totalorder %v26, 11
  %v1330 = vld [vmem:[%s1 + $0xb] sm:$0x1]
  %v1331 = vsel %vm1314, 1, 0
  %v1332 = vsel %vm1315, 1, 0
  %v1333 = vsel %vm1316, 1, 0
  %v1334 = vsel %vm1317, 1, 0
  %v1335 = vsel %vm1318, 1, 0
  %v1336 = vsel %vm1319, 1, 0
  %v1337 = vsel %vm1320, 1, 0
  %v1338 = vsel %vm1321, 1, 0
  %v1339 = vsel %vm1322, 1, 0
  %v1340 = vsel %vm1323, 1, 0
  %v1341 = vsel %vm1324, 1, 0
  %v1342 = vsel %vm1325, 1, 0
  %v1343 = vsel %vm1326, 1, 0
  %v1344 = vsel %vm1327, 1, 0
  %v1345 = vsel %vm1328, 1, 0
  %v1346 = vsel %vm1329, 1, 0
  %1347 = vset.pattern.permute.xlu0 0
  %1348 = vperm.xlu0 %1347, %v1331
  %v1349 = vpop.permute.xlu0 %1348
  %1350 = vset.pattern.permute.xlu0 0
  %1351 = vperm.xlu0 %1350, %v1332
  %v1352 = vpop.permute.xlu0 %1351
  %1353 = vset.pattern.permute.xlu0 0
  %1354 = vperm.xlu0 %1353, %v1333
  %v1355 = vpop.permute.xlu0 %1354
  %1356 = vset.pattern.permute.xlu0 0
  %1357 = vperm.xlu0 %1356, %v1334
  %v1358 = vpop.permute.xlu0 %1357
  %1359 = vset.pattern.permute.xlu0 0
  %1360 = vperm.xlu0 %1359, %v1335
  %v1361 = vpop.permute.xlu0 %1360
  %1362 = vset.pattern.permute.xlu0 0
  %1363 = vperm.xlu0 %1362, %v1336
  %v1364 = vpop.permute.xlu0 %1363
  %1365 = vset.pattern.permute.xlu0 0
  %1366 = vperm.xlu0 %1365, %v1337
  %v1367 = vpop.permute.xlu0 %1366
  %1368 = vset.pattern.permute.xlu0 0
  %1369 = vperm.xlu0 %1368, %v1338
  %v1370 = vpop.permute.xlu0 %1369
  %1371 = vset.pattern.permute.xlu0 0
  %1372 = vperm.xlu0 %1371, %v1339
  %v1373 = vpop.permute.xlu0 %1372
  %1374 = vset.pattern.permute.xlu0 0
  %1375 = vperm.xlu0 %1374, %v1340
  %v1376 = vpop.permute.xlu0 %1375
  %1377 = vset.pattern.permute.xlu0 0
  %1378 = vperm.xlu0 %1377, %v1341
  %v1379 = vpop.permute.xlu0 %1378
  %1380 = vset.pattern.permute.xlu0 0
  %1381 = vperm.xlu0 %1380, %v1342
  %v1382 = vpop.permute.xlu0 %1381
  %1383 = vset.pattern.permute.xlu0 0
  %1384 = vperm.xlu0 %1383, %v1343
  %v1385 = vpop.permute.xlu0 %1384
  %1386 = vset.pattern.permute.xlu0 0
  %1387 = vperm.xlu0 %1386, %v1344
  %v1388 = vpop.permute.xlu0 %1387
  %1389 = vset.pattern.permute.xlu0 0
  %1390 = vperm.xlu0 %1389, %v1345
  %v1391 = vpop.permute.xlu0 %1390
  %1392 = vset.pattern.permute.xlu0 0
  %1393 = vperm.xlu0 %1392, %v1346
  %v1394 = vpop.permute.xlu0 %1393
  %vm1395 = vcmp.eq.s32.totalorder %v1349, 1
  %vm1396 = vcmp.eq.s32.totalorder %v1352, 1
  %vm1397 = vcmp.eq.s32.totalorder %v1355, 1
  %vm1398 = vcmp.eq.s32.totalorder %v1358, 1
  %vm1399 = vcmp.eq.s32.totalorder %v1361, 1
  %vm1400 = vcmp.eq.s32.totalorder %v1364, 1
  %vm1401 = vcmp.eq.s32.totalorder %v1367, 1
  %vm1402 = vcmp.eq.s32.totalorder %v1370, 1
  %vm1403 = vcmp.eq.s32.totalorder %v1373, 1
  %vm1404 = vcmp.eq.s32.totalorder %v1376, 1
  %vm1405 = vcmp.eq.s32.totalorder %v1379, 1
  %vm1406 = vcmp.eq.s32.totalorder %v1382, 1
  %vm1407 = vcmp.eq.s32.totalorder %v1385, 1
  %vm1408 = vcmp.eq.s32.totalorder %v1388, 1
  %vm1409 = vcmp.eq.s32.totalorder %v1391, 1
  %vm1410 = vcmp.eq.s32.totalorder %v1394, 1
  %v1411 = vlaneseq
  %v1412 = vshrl.u32 %v1411, 7
  %v1413 = vsub.s32 0, %v1412
  %v1414 = vrot.slane %v1330, %v1413
  %v1415 = vsel %vm1395, %v1414, %v1298
  %v1416 = vsel %vm1396, %v1414, %v1299
  %v1417 = vsel %vm1397, %v1414, %v1300
  %v1418 = vsel %vm1398, %v1414, %v1301
  %v1419 = vsel %vm1399, %v1414, %v1302
  %v1420 = vsel %vm1400, %v1414, %v1303
  %v1421 = vsel %vm1401, %v1414, %v1304
  %v1422 = vsel %vm1402, %v1414, %v1305
  %v1423 = vsel %vm1403, %v1414, %v1306
  %v1424 = vsel %vm1404, %v1414, %v1307
  %v1425 = vsel %vm1405, %v1414, %v1308
  %v1426 = vsel %vm1406, %v1414, %v1309
  %v1427 = vsel %vm1407, %v1414, %v1310
  %v1428 = vsel %vm1408, %v1414, %v1311
  %v1429 = vsel %vm1409, %v1414, %v1312
  %v1430 = vsel %vm1410, %v1414, %v1313
  %vm1431 = vcmp.eq.s32.totalorder %v11, 12
  %vm1432 = vcmp.eq.s32.totalorder %v12, 12
  %vm1433 = vcmp.eq.s32.totalorder %v13, 12
  %vm1434 = vcmp.eq.s32.totalorder %v14, 12
  %vm1435 = vcmp.eq.s32.totalorder %v15, 12
  %vm1436 = vcmp.eq.s32.totalorder %v16, 12
  %vm1437 = vcmp.eq.s32.totalorder %v17, 12
  %vm1438 = vcmp.eq.s32.totalorder %v18, 12
  %vm1439 = vcmp.eq.s32.totalorder %v19, 12
  %vm1440 = vcmp.eq.s32.totalorder %v20, 12
  %vm1441 = vcmp.eq.s32.totalorder %v21, 12
  %vm1442 = vcmp.eq.s32.totalorder %v22, 12
  %vm1443 = vcmp.eq.s32.totalorder %v23, 12
  %vm1444 = vcmp.eq.s32.totalorder %v24, 12
  %vm1445 = vcmp.eq.s32.totalorder %v25, 12
  %vm1446 = vcmp.eq.s32.totalorder %v26, 12
  %v1447 = vld [vmem:[%s1 + $0xc] sm:$0x1]
  %v1448 = vsel %vm1431, 1, 0
  %v1449 = vsel %vm1432, 1, 0
  %v1450 = vsel %vm1433, 1, 0
  %v1451 = vsel %vm1434, 1, 0
  %v1452 = vsel %vm1435, 1, 0
  %v1453 = vsel %vm1436, 1, 0
  %v1454 = vsel %vm1437, 1, 0
  %v1455 = vsel %vm1438, 1, 0
  %v1456 = vsel %vm1439, 1, 0
  %v1457 = vsel %vm1440, 1, 0
  %v1458 = vsel %vm1441, 1, 0
  %v1459 = vsel %vm1442, 1, 0
  %v1460 = vsel %vm1443, 1, 0
  %v1461 = vsel %vm1444, 1, 0
  %v1462 = vsel %vm1445, 1, 0
  %v1463 = vsel %vm1446, 1, 0
  %1464 = vset.pattern.permute.xlu0 0
  %1465 = vperm.xlu0 %1464, %v1448
  %v1466 = vpop.permute.xlu0 %1465
  %1467 = vset.pattern.permute.xlu0 0
  %1468 = vperm.xlu0 %1467, %v1449
  %v1469 = vpop.permute.xlu0 %1468
  %1470 = vset.pattern.permute.xlu0 0
  %1471 = vperm.xlu0 %1470, %v1450
  %v1472 = vpop.permute.xlu0 %1471
  %1473 = vset.pattern.permute.xlu0 0
  %1474 = vperm.xlu0 %1473, %v1451
  %v1475 = vpop.permute.xlu0 %1474
  %1476 = vset.pattern.permute.xlu0 0
  %1477 = vperm.xlu0 %1476, %v1452
  %v1478 = vpop.permute.xlu0 %1477
  %1479 = vset.pattern.permute.xlu0 0
  %1480 = vperm.xlu0 %1479, %v1453
  %v1481 = vpop.permute.xlu0 %1480
  %1482 = vset.pattern.permute.xlu0 0
  %1483 = vperm.xlu0 %1482, %v1454
  %v1484 = vpop.permute.xlu0 %1483
  %1485 = vset.pattern.permute.xlu0 0
  %1486 = vperm.xlu0 %1485, %v1455
  %v1487 = vpop.permute.xlu0 %1486
  %1488 = vset.pattern.permute.xlu0 0
  %1489 = vperm.xlu0 %1488, %v1456
  %v1490 = vpop.permute.xlu0 %1489
  %1491 = vset.pattern.permute.xlu0 0
  %1492 = vperm.xlu0 %1491, %v1457
  %v1493 = vpop.permute.xlu0 %1492
  %1494 = vset.pattern.permute.xlu0 0
  %1495 = vperm.xlu0 %1494, %v1458
  %v1496 = vpop.permute.xlu0 %1495
  %1497 = vset.pattern.permute.xlu0 0
  %1498 = vperm.xlu0 %1497, %v1459
  %v1499 = vpop.permute.xlu0 %1498
  %1500 = vset.pattern.permute.xlu0 0
  %1501 = vperm.xlu0 %1500, %v1460
  %v1502 = vpop.permute.xlu0 %1501
  %1503 = vset.pattern.permute.xlu0 0
  %1504 = vperm.xlu0 %1503, %v1461
  %v1505 = vpop.permute.xlu0 %1504
  %1506 = vset.pattern.permute.xlu0 0
  %1507 = vperm.xlu0 %1506, %v1462
  %v1508 = vpop.permute.xlu0 %1507
  %1509 = vset.pattern.permute.xlu0 0
  %1510 = vperm.xlu0 %1509, %v1463
  %v1511 = vpop.permute.xlu0 %1510
  %vm1512 = vcmp.eq.s32.totalorder %v1466, 1
  %vm1513 = vcmp.eq.s32.totalorder %v1469, 1
  %vm1514 = vcmp.eq.s32.totalorder %v1472, 1
  %vm1515 = vcmp.eq.s32.totalorder %v1475, 1
  %vm1516 = vcmp.eq.s32.totalorder %v1478, 1
  %vm1517 = vcmp.eq.s32.totalorder %v1481, 1
  %vm1518 = vcmp.eq.s32.totalorder %v1484, 1
  %vm1519 = vcmp.eq.s32.totalorder %v1487, 1
  %vm1520 = vcmp.eq.s32.totalorder %v1490, 1
  %vm1521 = vcmp.eq.s32.totalorder %v1493, 1
  %vm1522 = vcmp.eq.s32.totalorder %v1496, 1
  %vm1523 = vcmp.eq.s32.totalorder %v1499, 1
  %vm1524 = vcmp.eq.s32.totalorder %v1502, 1
  %vm1525 = vcmp.eq.s32.totalorder %v1505, 1
  %vm1526 = vcmp.eq.s32.totalorder %v1508, 1
  %vm1527 = vcmp.eq.s32.totalorder %v1511, 1
  %v1528 = vlaneseq
  %v1529 = vshrl.u32 %v1528, 7
  %v1530 = vsub.s32 0, %v1529
  %v1531 = vrot.slane %v1447, %v1530
  %v1532 = vsel %vm1512, %v1531, %v1415
  %v1533 = vsel %vm1513, %v1531, %v1416
  %v1534 = vsel %vm1514, %v1531, %v1417
  %v1535 = vsel %vm1515, %v1531, %v1418
  %v1536 = vsel %vm1516, %v1531, %v1419
  %v1537 = vsel %vm1517, %v1531, %v1420
  %v1538 = vsel %vm1518, %v1531, %v1421
  %v1539 = vsel %vm1519, %v1531, %v1422
  %v1540 = vsel %vm1520, %v1531, %v1423
  %v1541 = vsel %vm1521, %v1531, %v1424
  %v1542 = vsel %vm1522, %v1531, %v1425
  %v1543 = vsel %vm1523, %v1531, %v1426
  %v1544 = vsel %vm1524, %v1531, %v1427
  %v1545 = vsel %vm1525, %v1531, %v1428
  %v1546 = vsel %vm1526, %v1531, %v1429
  %v1547 = vsel %vm1527, %v1531, %v1430
  %vm1548 = vcmp.eq.s32.totalorder %v11, 13
  %vm1549 = vcmp.eq.s32.totalorder %v12, 13
  %vm1550 = vcmp.eq.s32.totalorder %v13, 13
  %vm1551 = vcmp.eq.s32.totalorder %v14, 13
  %vm1552 = vcmp.eq.s32.totalorder %v15, 13
  %vm1553 = vcmp.eq.s32.totalorder %v16, 13
  %vm1554 = vcmp.eq.s32.totalorder %v17, 13
  %vm1555 = vcmp.eq.s32.totalorder %v18, 13
  %vm1556 = vcmp.eq.s32.totalorder %v19, 13
  %vm1557 = vcmp.eq.s32.totalorder %v20, 13
  %vm1558 = vcmp.eq.s32.totalorder %v21, 13
  %vm1559 = vcmp.eq.s32.totalorder %v22, 13
  %vm1560 = vcmp.eq.s32.totalorder %v23, 13
  %vm1561 = vcmp.eq.s32.totalorder %v24, 13
  %vm1562 = vcmp.eq.s32.totalorder %v25, 13
  %vm1563 = vcmp.eq.s32.totalorder %v26, 13
  %v1564 = vld [vmem:[%s1 + $0xd] sm:$0x1]
  %v1565 = vsel %vm1548, 1, 0
  %v1566 = vsel %vm1549, 1, 0
  %v1567 = vsel %vm1550, 1, 0
  %v1568 = vsel %vm1551, 1, 0
  %v1569 = vsel %vm1552, 1, 0
  %v1570 = vsel %vm1553, 1, 0
  %v1571 = vsel %vm1554, 1, 0
  %v1572 = vsel %vm1555, 1, 0
  %v1573 = vsel %vm1556, 1, 0
  %v1574 = vsel %vm1557, 1, 0
  %v1575 = vsel %vm1558, 1, 0
  %v1576 = vsel %vm1559, 1, 0
  %v1577 = vsel %vm1560, 1, 0
  %v1578 = vsel %vm1561, 1, 0
  %v1579 = vsel %vm1562, 1, 0
  %v1580 = vsel %vm1563, 1, 0
  %1581 = vset.pattern.permute.xlu0 0
  %1582 = vperm.xlu0 %1581, %v1565
  %v1583 = vpop.permute.xlu0 %1582
  %1584 = vset.pattern.permute.xlu0 0
  %1585 = vperm.xlu0 %1584, %v1566
  %v1586 = vpop.permute.xlu0 %1585
  %1587 = vset.pattern.permute.xlu0 0
  %1588 = vperm.xlu0 %1587, %v1567
  %v1589 = vpop.permute.xlu0 %1588
  %1590 = vset.pattern.permute.xlu0 0
  %1591 = vperm.xlu0 %1590, %v1568
  %v1592 = vpop.permute.xlu0 %1591
  %1593 = vset.pattern.permute.xlu0 0
  %1594 = vperm.xlu0 %1593, %v1569
  %v1595 = vpop.permute.xlu0 %1594
  %1596 = vset.pattern.permute.xlu0 0
  %1597 = vperm.xlu0 %1596, %v1570
  %v1598 = vpop.permute.xlu0 %1597
  %1599 = vset.pattern.permute.xlu0 0
  %1600 = vperm.xlu0 %1599, %v1571
  %v1601 = vpop.permute.xlu0 %1600
  %1602 = vset.pattern.permute.xlu0 0
  %1603 = vperm.xlu0 %1602, %v1572
  %v1604 = vpop.permute.xlu0 %1603
  %1605 = vset.pattern.permute.xlu0 0
  %1606 = vperm.xlu0 %1605, %v1573
  %v1607 = vpop.permute.xlu0 %1606
  %1608 = vset.pattern.permute.xlu0 0
  %1609 = vperm.xlu0 %1608, %v1574
  %v1610 = vpop.permute.xlu0 %1609
  %1611 = vset.pattern.permute.xlu0 0
  %1612 = vperm.xlu0 %1611, %v1575
  %v1613 = vpop.permute.xlu0 %1612
  %1614 = vset.pattern.permute.xlu0 0
  %1615 = vperm.xlu0 %1614, %v1576
  %v1616 = vpop.permute.xlu0 %1615
  %1617 = vset.pattern.permute.xlu0 0
  %1618 = vperm.xlu0 %1617, %v1577
  %v1619 = vpop.permute.xlu0 %1618
  %1620 = vset.pattern.permute.xlu0 0
  %1621 = vperm.xlu0 %1620, %v1578
  %v1622 = vpop.permute.xlu0 %1621
  %1623 = vset.pattern.permute.xlu0 0
  %1624 = vperm.xlu0 %1623, %v1579
  %v1625 = vpop.permute.xlu0 %1624
  %1626 = vset.pattern.permute.xlu0 0
  %1627 = vperm.xlu0 %1626, %v1580
  %v1628 = vpop.permute.xlu0 %1627
  %vm1629 = vcmp.eq.s32.totalorder %v1583, 1
  %vm1630 = vcmp.eq.s32.totalorder %v1586, 1
  %vm1631 = vcmp.eq.s32.totalorder %v1589, 1
  %vm1632 = vcmp.eq.s32.totalorder %v1592, 1
  %vm1633 = vcmp.eq.s32.totalorder %v1595, 1
  %vm1634 = vcmp.eq.s32.totalorder %v1598, 1
  %vm1635 = vcmp.eq.s32.totalorder %v1601, 1
  %vm1636 = vcmp.eq.s32.totalorder %v1604, 1
  %vm1637 = vcmp.eq.s32.totalorder %v1607, 1
  %vm1638 = vcmp.eq.s32.totalorder %v1610, 1
  %vm1639 = vcmp.eq.s32.totalorder %v1613, 1
  %vm1640 = vcmp.eq.s32.totalorder %v1616, 1
  %vm1641 = vcmp.eq.s32.totalorder %v1619, 1
  %vm1642 = vcmp.eq.s32.totalorder %v1622, 1
  %vm1643 = vcmp.eq.s32.totalorder %v1625, 1
  %vm1644 = vcmp.eq.s32.totalorder %v1628, 1
  %v1645 = vlaneseq
  %v1646 = vshrl.u32 %v1645, 7
  %v1647 = vsub.s32 0, %v1646
  %v1648 = vrot.slane %v1564, %v1647
  %v1649 = vsel %vm1629, %v1648, %v1532
  %v1650 = vsel %vm1630, %v1648, %v1533
  %v1651 = vsel %vm1631, %v1648, %v1534
  %v1652 = vsel %vm1632, %v1648, %v1535
  %v1653 = vsel %vm1633, %v1648, %v1536
  %v1654 = vsel %vm1634, %v1648, %v1537
  %v1655 = vsel %vm1635, %v1648, %v1538
  %v1656 = vsel %vm1636, %v1648, %v1539
  %v1657 = vsel %vm1637, %v1648, %v1540
  %v1658 = vsel %vm1638, %v1648, %v1541
  %v1659 = vsel %vm1639, %v1648, %v1542
  %v1660 = vsel %vm1640, %v1648, %v1543
  %v1661 = vsel %vm1641, %v1648, %v1544
  %v1662 = vsel %vm1642, %v1648, %v1545
  %v1663 = vsel %vm1643, %v1648, %v1546
  %v1664 = vsel %vm1644, %v1648, %v1547
  %vm1665 = vcmp.eq.s32.totalorder %v11, 14
  %vm1666 = vcmp.eq.s32.totalorder %v12, 14
  %vm1667 = vcmp.eq.s32.totalorder %v13, 14
  %vm1668 = vcmp.eq.s32.totalorder %v14, 14
  %vm1669 = vcmp.eq.s32.totalorder %v15, 14
  %vm1670 = vcmp.eq.s32.totalorder %v16, 14
  %vm1671 = vcmp.eq.s32.totalorder %v17, 14
  %vm1672 = vcmp.eq.s32.totalorder %v18, 14
  %vm1673 = vcmp.eq.s32.totalorder %v19, 14
  %vm1674 = vcmp.eq.s32.totalorder %v20, 14
  %vm1675 = vcmp.eq.s32.totalorder %v21, 14
  %vm1676 = vcmp.eq.s32.totalorder %v22, 14
  %vm1677 = vcmp.eq.s32.totalorder %v23, 14
  %vm1678 = vcmp.eq.s32.totalorder %v24, 14
  %vm1679 = vcmp.eq.s32.totalorder %v25, 14
  %vm1680 = vcmp.eq.s32.totalorder %v26, 14
  %v1681 = vld [vmem:[%s1 + $0xe] sm:$0x1]
  %v1682 = vsel %vm1665, 1, 0
  %v1683 = vsel %vm1666, 1, 0
  %v1684 = vsel %vm1667, 1, 0
  %v1685 = vsel %vm1668, 1, 0
  %v1686 = vsel %vm1669, 1, 0
  %v1687 = vsel %vm1670, 1, 0
  %v1688 = vsel %vm1671, 1, 0
  %v1689 = vsel %vm1672, 1, 0
  %v1690 = vsel %vm1673, 1, 0
  %v1691 = vsel %vm1674, 1, 0
  %v1692 = vsel %vm1675, 1, 0
  %v1693 = vsel %vm1676, 1, 0
  %v1694 = vsel %vm1677, 1, 0
  %v1695 = vsel %vm1678, 1, 0
  %v1696 = vsel %vm1679, 1, 0
  %v1697 = vsel %vm1680, 1, 0
  %1698 = vset.pattern.permute.xlu0 0
  %1699 = vperm.xlu0 %1698, %v1682
  %v1700 = vpop.permute.xlu0 %1699
  %1701 = vset.pattern.permute.xlu0 0
  %1702 = vperm.xlu0 %1701, %v1683
  %v1703 = vpop.permute.xlu0 %1702
  %1704 = vset.pattern.permute.xlu0 0
  %1705 = vperm.xlu0 %1704, %v1684
  %v1706 = vpop.permute.xlu0 %1705
  %1707 = vset.pattern.permute.xlu0 0
  %1708 = vperm.xlu0 %1707, %v1685
  %v1709 = vpop.permute.xlu0 %1708
  %1710 = vset.pattern.permute.xlu0 0
  %1711 = vperm.xlu0 %1710, %v1686
  %v1712 = vpop.permute.xlu0 %1711
  %1713 = vset.pattern.permute.xlu0 0
  %1714 = vperm.xlu0 %1713, %v1687
  %v1715 = vpop.permute.xlu0 %1714
  %1716 = vset.pattern.permute.xlu0 0
  %1717 = vperm.xlu0 %1716, %v1688
  %v1718 = vpop.permute.xlu0 %1717
  %1719 = vset.pattern.permute.xlu0 0
  %1720 = vperm.xlu0 %1719, %v1689
  %v1721 = vpop.permute.xlu0 %1720
  %1722 = vset.pattern.permute.xlu0 0
  %1723 = vperm.xlu0 %1722, %v1690
  %v1724 = vpop.permute.xlu0 %1723
  %1725 = vset.pattern.permute.xlu0 0
  %1726 = vperm.xlu0 %1725, %v1691
  %v1727 = vpop.permute.xlu0 %1726
  %1728 = vset.pattern.permute.xlu0 0
  %1729 = vperm.xlu0 %1728, %v1692
  %v1730 = vpop.permute.xlu0 %1729
  %1731 = vset.pattern.permute.xlu0 0
  %1732 = vperm.xlu0 %1731, %v1693
  %v1733 = vpop.permute.xlu0 %1732
  %1734 = vset.pattern.permute.xlu0 0
  %1735 = vperm.xlu0 %1734, %v1694
  %v1736 = vpop.permute.xlu0 %1735
  %1737 = vset.pattern.permute.xlu0 0
  %1738 = vperm.xlu0 %1737, %v1695
  %v1739 = vpop.permute.xlu0 %1738
  %1740 = vset.pattern.permute.xlu0 0
  %1741 = vperm.xlu0 %1740, %v1696
  %v1742 = vpop.permute.xlu0 %1741
  %1743 = vset.pattern.permute.xlu0 0
  %1744 = vperm.xlu0 %1743, %v1697
  %v1745 = vpop.permute.xlu0 %1744
  %vm1746 = vcmp.eq.s32.totalorder %v1700, 1
  %vm1747 = vcmp.eq.s32.totalorder %v1703, 1
  %vm1748 = vcmp.eq.s32.totalorder %v1706, 1
  %vm1749 = vcmp.eq.s32.totalorder %v1709, 1
  %vm1750 = vcmp.eq.s32.totalorder %v1712, 1
  %vm1751 = vcmp.eq.s32.totalorder %v1715, 1
  %vm1752 = vcmp.eq.s32.totalorder %v1718, 1
  %vm1753 = vcmp.eq.s32.totalorder %v1721, 1
  %vm1754 = vcmp.eq.s32.totalorder %v1724, 1
  %vm1755 = vcmp.eq.s32.totalorder %v1727, 1
  %vm1756 = vcmp.eq.s32.totalorder %v1730, 1
  %vm1757 = vcmp.eq.s32.totalorder %v1733, 1
  %vm1758 = vcmp.eq.s32.totalorder %v1736, 1
  %vm1759 = vcmp.eq.s32.totalorder %v1739, 1
  %vm1760 = vcmp.eq.s32.totalorder %v1742, 1
  %vm1761 = vcmp.eq.s32.totalorder %v1745, 1
  %v1762 = vlaneseq
  %v1763 = vshrl.u32 %v1762, 7
  %v1764 = vsub.s32 0, %v1763
  %v1765 = vrot.slane %v1681, %v1764
  %v1766 = vsel %vm1746, %v1765, %v1649
  %v1767 = vsel %vm1747, %v1765, %v1650
  %v1768 = vsel %vm1748, %v1765, %v1651
  %v1769 = vsel %vm1749, %v1765, %v1652
  %v1770 = vsel %vm1750, %v1765, %v1653
  %v1771 = vsel %vm1751, %v1765, %v1654
  %v1772 = vsel %vm1752, %v1765, %v1655
  %v1773 = vsel %vm1753, %v1765, %v1656
  %v1774 = vsel %vm1754, %v1765, %v1657
  %v1775 = vsel %vm1755, %v1765, %v1658
  %v1776 = vsel %vm1756, %v1765, %v1659
  %v1777 = vsel %vm1757, %v1765, %v1660
  %v1778 = vsel %vm1758, %v1765, %v1661
  %v1779 = vsel %vm1759, %v1765, %v1662
  %v1780 = vsel %vm1760, %v1765, %v1663
  %v1781 = vsel %vm1761, %v1765, %v1664
  %vm1782 = vcmp.eq.s32.totalorder %v11, 15
  %vm1783 = vcmp.eq.s32.totalorder %v12, 15
  %vm1784 = vcmp.eq.s32.totalorder %v13, 15
  %vm1785 = vcmp.eq.s32.totalorder %v14, 15
  %vm1786 = vcmp.eq.s32.totalorder %v15, 15
  %vm1787 = vcmp.eq.s32.totalorder %v16, 15
  %vm1788 = vcmp.eq.s32.totalorder %v17, 15
  %vm1789 = vcmp.eq.s32.totalorder %v18, 15
  %vm1790 = vcmp.eq.s32.totalorder %v19, 15
  %vm1791 = vcmp.eq.s32.totalorder %v20, 15
  %vm1792 = vcmp.eq.s32.totalorder %v21, 15
  %vm1793 = vcmp.eq.s32.totalorder %v22, 15
  %vm1794 = vcmp.eq.s32.totalorder %v23, 15
  %vm1795 = vcmp.eq.s32.totalorder %v24, 15
  %vm1796 = vcmp.eq.s32.totalorder %v25, 15
  %vm1797 = vcmp.eq.s32.totalorder %v26, 15
  %v1798 = vld [vmem:[%s1 + $0xf] sm:$0x1]
  %v1799 = vsel %vm1782, 1, 0
  %v1800 = vsel %vm1783, 1, 0
  %v1801 = vsel %vm1784, 1, 0
  %v1802 = vsel %vm1785, 1, 0
  %v1803 = vsel %vm1786, 1, 0
  %v1804 = vsel %vm1787, 1, 0
  %v1805 = vsel %vm1788, 1, 0
  %v1806 = vsel %vm1789, 1, 0
  %v1807 = vsel %vm1790, 1, 0
  %v1808 = vsel %vm1791, 1, 0
  %v1809 = vsel %vm1792, 1, 0
  %v1810 = vsel %vm1793, 1, 0
  %v1811 = vsel %vm1794, 1, 0
  %v1812 = vsel %vm1795, 1, 0
  %v1813 = vsel %vm1796, 1, 0
  %v1814 = vsel %vm1797, 1, 0
  %1815 = vset.pattern.permute.xlu0 0
  %1816 = vperm.xlu0 %1815, %v1799
  %v1817 = vpop.permute.xlu0 %1816
  %1818 = vset.pattern.permute.xlu0 0
  %1819 = vperm.xlu0 %1818, %v1800
  %v1820 = vpop.permute.xlu0 %1819
  %1821 = vset.pattern.permute.xlu0 0
  %1822 = vperm.xlu0 %1821, %v1801
  %v1823 = vpop.permute.xlu0 %1822
  %1824 = vset.pattern.permute.xlu0 0
  %1825 = vperm.xlu0 %1824, %v1802
  %v1826 = vpop.permute.xlu0 %1825
  %1827 = vset.pattern.permute.xlu0 0
  %1828 = vperm.xlu0 %1827, %v1803
  %v1829 = vpop.permute.xlu0 %1828
  %1830 = vset.pattern.permute.xlu0 0
  %1831 = vperm.xlu0 %1830, %v1804
  %v1832 = vpop.permute.xlu0 %1831
  %1833 = vset.pattern.permute.xlu0 0
  %1834 = vperm.xlu0 %1833, %v1805
  %v1835 = vpop.permute.xlu0 %1834
  %1836 = vset.pattern.permute.xlu0 0
  %1837 = vperm.xlu0 %1836, %v1806
  %v1838 = vpop.permute.xlu0 %1837
  %1839 = vset.pattern.permute.xlu0 0
  %1840 = vperm.xlu0 %1839, %v1807
  %v1841 = vpop.permute.xlu0 %1840
  %1842 = vset.pattern.permute.xlu0 0
  %1843 = vperm.xlu0 %1842, %v1808
  %v1844 = vpop.permute.xlu0 %1843
  %1845 = vset.pattern.permute.xlu0 0
  %1846 = vperm.xlu0 %1845, %v1809
  %v1847 = vpop.permute.xlu0 %1846
  %1848 = vset.pattern.permute.xlu0 0
  %1849 = vperm.xlu0 %1848, %v1810
  %v1850 = vpop.permute.xlu0 %1849
  %1851 = vset.pattern.permute.xlu0 0
  %1852 = vperm.xlu0 %1851, %v1811
  %v1853 = vpop.permute.xlu0 %1852
  %1854 = vset.pattern.permute.xlu0 0
  %1855 = vperm.xlu0 %1854, %v1812
  %v1856 = vpop.permute.xlu0 %1855
  %1857 = vset.pattern.permute.xlu0 0
  %1858 = vperm.xlu0 %1857, %v1813
  %v1859 = vpop.permute.xlu0 %1858
  %1860 = vset.pattern.permute.xlu0 0
  %1861 = vperm.xlu0 %1860, %v1814
  %v1862 = vpop.permute.xlu0 %1861
  %vm1863 = vcmp.eq.s32.totalorder %v1817, 1
  %vm1864 = vcmp.eq.s32.totalorder %v1820, 1
  %vm1865 = vcmp.eq.s32.totalorder %v1823, 1
  %vm1866 = vcmp.eq.s32.totalorder %v1826, 1
  %vm1867 = vcmp.eq.s32.totalorder %v1829, 1
  %vm1868 = vcmp.eq.s32.totalorder %v1832, 1
  %vm1869 = vcmp.eq.s32.totalorder %v1835, 1
  %vm1870 = vcmp.eq.s32.totalorder %v1838, 1
  %vm1871 = vcmp.eq.s32.totalorder %v1841, 1
  %vm1872 = vcmp.eq.s32.totalorder %v1844, 1
  %vm1873 = vcmp.eq.s32.totalorder %v1847, 1
  %vm1874 = vcmp.eq.s32.totalorder %v1850, 1
  %vm1875 = vcmp.eq.s32.totalorder %v1853, 1
  %vm1876 = vcmp.eq.s32.totalorder %v1856, 1
  %vm1877 = vcmp.eq.s32.totalorder %v1859, 1
  %vm1878 = vcmp.eq.s32.totalorder %v1862, 1
  %v1879 = vlaneseq
  %v1880 = vshrl.u32 %v1879, 7
  %v1881 = vsub.s32 0, %v1880
  %v1882 = vrot.slane %v1798, %v1881
  %v1883 = vsel %vm1863, %v1882, %v1766
  %v1884 = vsel %vm1864, %v1882, %v1767
  %v1885 = vsel %vm1865, %v1882, %v1768
  %v1886 = vsel %vm1866, %v1882, %v1769
  %v1887 = vsel %vm1867, %v1882, %v1770
  %v1888 = vsel %vm1868, %v1882, %v1771
  %v1889 = vsel %vm1869, %v1882, %v1772
  %v1890 = vsel %vm1870, %v1882, %v1773
  %v1891 = vsel %vm1871, %v1882, %v1774
  %v1892 = vsel %vm1872, %v1882, %v1775
  %v1893 = vsel %vm1873, %v1882, %v1776
  %v1894 = vsel %vm1874, %v1882, %v1777
  %v1895 = vsel %vm1875, %v1882, %v1778
  %v1896 = vsel %vm1876, %v1882, %v1779
  %v1897 = vsel %vm1877, %v1882, %v1780
  %v1898 = vsel %vm1878, %v1882, %v1781
  %vm1899 = vcmask 89088
  %1900 = vst.msk [vmem:[%s2] sm:$0xff] %vm1899, %v1883
  %1901 = vst.msk [vmem:[%s2 + $0x8] sm:$0xff] %vm1899, %v1884
  %1902 = vst.msk [vmem:[%s2 + $0x10] sm:$0xff] %vm1899, %v1885
  %1903 = vst.msk [vmem:[%s2 + $0x18] sm:$0xff] %vm1899, %v1886
  %1904 = vst.msk [vmem:[%s2 + $0x20] sm:$0xff] %vm1899, %v1887
  %1905 = vst.msk [vmem:[%s2 + $0x28] sm:$0xff] %vm1899, %v1888
  %1906 = vst.msk [vmem:[%s2 + $0x30] sm:$0xff] %vm1899, %v1889
  %1907 = vst.msk [vmem:[%s2 + $0x38] sm:$0xff] %vm1899, %v1890
  %1908 = vst.msk [vmem:[%s2 + $0x40] sm:$0xff] %vm1899, %v1891
  %1909 = vst.msk [vmem:[%s2 + $0x48] sm:$0xff] %vm1899, %v1892
  %1910 = vst.msk [vmem:[%s2 + $0x50] sm:$0xff] %vm1899, %v1893
  %1911 = vst.msk [vmem:[%s2 + $0x58] sm:$0xff] %vm1899, %v1894
  %1912 = vst.msk [vmem:[%s2 + $0x60] sm:$0xff] %vm1899, %v1895
  %1913 = vst.msk [vmem:[%s2 + $0x68] sm:$0xff] %vm1899, %v1896
  %1914 = vst.msk [vmem:[%s2 + $0x70] sm:$0xff] %vm1899, %v1897
  %1915 = vst.msk [vmem:[%s2 + $0x78] sm:$0xff] %vm1899, %v1898
  // Predicated region
  $region10: #{tpu_custom_call.1} parent=0 // pred_check
    _
  $region11: #{tpu_custom_call.1} parent=0 // pred_check_branch
    %1917 = sbr.rel (0) target = $region13
  $region12: #{tpu_custom_call.1} parent=0 // pred_region
    _
  $region13: #{tpu_custom_call.1} parent=0 // pred_fallthru
    _
  // Predicated region
  $region14: #{tpu_custom_call.1} parent=0 // pred_check
    _
  $region15: #{tpu_custom_call.1} parent=0 // pred_check_branch
    %1919 = sbr.rel (0) target = $region17
  $region16: #{tpu_custom_call.1} parent=0 // pred_region
    _
  $region17: #{tpu_custom_call.1} parent=0 // pred_fallthru
    _

</llo_original>
